<compile_context>
chip_gen: v7x
topology: tpu7x:2x2x1
jax: 0.10.0
libtpu: 0.0.40
codegen_flags: <defaults>
</compile_context>

<pallas_src>
import functools

import numpy as np
import jax
import jax.numpy as jnp
from jax.experimental import pallas as pl
from jax.experimental.pallas import tpu as pltpu


# ----------------------------------------------------------------------------
# generation-aware budgets
# ----------------------------------------------------------------------------
def _tpu_generation():
    try:
        kind = jax.devices()[0].device_kind.lower()
    except Exception:
        return 0
    for g in (7, 6, 5, 4):
        if "v%d" % g in kind:
            return g
    return 0


_GEN = _tpu_generation()
_IS_V7 = _GEN >= 7
if _GEN >= 7:
    _VMEM_LIMIT = 44 * 1024 * 1024      # v7x: 64 MiB physical -> leave headroom
elif _GEN >= 4:
    _VMEM_LIMIT = 96 * 1024 * 1024      # v4/v5e/v6e: 128 MiB physical VMEM
else:
    _VMEM_LIMIT = 48 * 1024 * 1024      # unknown generation: conservative default
_ROW_TILE_HARD_CAP = 32 if _IS_V7 else 64


def _round_up(x, m):
    return (x + m - 1) // m * m


def _pad128(c):
    return _round_up(c, 128)


def _pad_to(a, shape):
    pads = [(0, t - s) for s, t in zip(a.shape, shape)]
    return jnp.pad(a, pads)


# ----------------------------------------------------------------------------
# activations (static selection, applied inside kernels, always in f32)
# ----------------------------------------------------------------------------
def _apply_act(y, act):
    if act == "relu":
        return jnp.maximum(y, 0.0)
    if act == "hswish":
        return y * jnp.clip(y + 3.0, 0.0, 6.0) * (1.0 / 6.0)
    if act == "hsigmoid":
        return jnp.clip(y + 3.0, 0.0, 6.0) * (1.0 / 6.0)
    return y  # linear


# ----------------------------------------------------------------------------
# pointwise (1x1) conv kernels: bf16 MXU matmul + folded BN + activation
# ----------------------------------------------------------------------------
def _mm_kernel(x_ref, w_ref, s_ref, b_ref, o_ref, *, act):
    y = jnp.dot(x_ref[...], w_ref[...], preferred_element_type=jnp.float32)
    y = y * s_ref[...] + b_ref[...]
    o_ref[...] = _apply_act(y, act).astype(o_ref.dtype)


def _mm_res_kernel(x_ref, w_ref, s_ref, b_ref, r_ref, o_ref, *, act):
    y = jnp.dot(x_ref[...], w_ref[...], preferred_element_type=jnp.float32)
    y = y * s_ref[...] + b_ref[...]
    y = _apply_act(y, act) + r_ref[...].astype(jnp.float32)
    o_ref[...] = y.astype(o_ref.dtype)


def _pick_tm(M):
    if M >= 4096:
        return 512 if _IS_V7 else 1024
    if M >= 1024:
        return 512
    return 256


def _matmul_bn_act(x2, w, scale, bias, act, residual=None):
    M, K = x2.shape
    Nout = w.shape[1]
    TM = _pick_tm(M)                         # always >= 256, multiple of 16 (bf16 stores)
    Mpad = _round_up(M, TM)
    if Mpad != M:
        x2 = jnp.pad(x2, ((0, Mpad - M), (0, 0)))
        if residual is not None:
            residual = jnp.pad(residual, ((0, Mpad - M), (0, 0)))
    grid = (Mpad // TM,)

    in_specs = [
        pl.BlockSpec((TM, K), lambda i: (i, 0)),
        pl.BlockSpec((K, Nout), lambda i: (0, 0)),
        pl.BlockSpec((1, Nout), lambda i: (0, 0)),
        pl.BlockSpec((1, Nout), lambda i: (0, 0)),
    ]
    args = [x2, w, scale, bias]
    if residual is None:
        kernel = functools.partial(_mm_kernel, act=act)
    else:
        in_specs.append(pl.BlockSpec((TM, Nout), lambda i: (i, 0)))
        args.append(residual)
        kernel = functools.partial(_mm_res_kernel, act=act)

    cost = pl.CostEstimate(
        flops=int(2 * Mpad * K * Nout),
        transcendentals=0,
        bytes_accessed=int(2 * (Mpad * K + K * Nout + 2 * Mpad * Nout)),
    )
    out = pl.pallas_call(
        kernel,
        out_shape=jax.ShapeDtypeStruct((Mpad, Nout), jnp.bfloat16),
        grid=grid,
        in_specs=in_specs,
        out_specs=pl.BlockSpec((TM, Nout), lambda i: (i, 0)),
        compiler_params=pltpu.CompilerParams(
            dimension_semantics=("parallel",),
            vmem_limit_bytes=_VMEM_LIMIT),
        cost_estimate=cost,
    )(*args)
    return out[:M] if Mpad != M else out


def _pointwise_bn_act(x, w, scale, bias, act, residual=None):
    # 1x1 conv == matmul over flattened spatial positions.
    N, H, W, C = x.shape
    Cout = w.shape[1]
    x2 = x.reshape(N * H * W, C)
    r2 = residual.reshape(N * H * W, Cout) if residual is not None else None
    out2 = _matmul_bn_act(x2, w, scale, bias, act, r2)
    return out2.reshape(N, H, W, Cout)


# ----------------------------------------------------------------------------
# depthwise KxK conv + folded BN (+ fused Squeeze-Excite) + activations
# ----------------------------------------------------------------------------
def _make_dw_kernel(k, stride, use_se, has_halo, pre_act, post_act):
    """One (batch, row-tile) block of a depthwise conv.

    stride-2 inputs arrive phase-folded as (rows/2, 2, cols/2, 2*C): the H phase is a
    size-2 axis and the W phase is folded into the (128-aligned) lane dim, so the
    decimation is plain in-kernel slicing rather than strided HBM tensors.
    The (k-1)-row halo (when row-tiled) arrives as a second input block.
    """
    def kernel(*refs):
        idx = 0
        x = refs[idx][...]
        idx += 1
        if has_halo:
            x = jnp.concatenate([x, refs[idx][...]], axis=0)
            idx += 1
        w_ref, s_ref, b_ref = refs[idx], refs[idx + 1], refs[idx + 2]
        idx += 3
        if use_se:
            w1_ref, b1_ref, w2_ref, b2_ref = refs[idx:idx + 4]
            idx += 4
        o_ref = refs[idx]

        TH, Wo, C = o_ref.shape
        w_all = w_ref[...].astype(jnp.float32)              # (k*k, C), hoisted once
        acc = jnp.zeros((TH, Wo, C), jnp.float32)
        # TODO(synk): XLU-roll based W-offset taps would avoid sublane-crossing slice
        # copies inside this loop; kept as plain slices for robustness.
        for ky in range(k):
            for kx in range(k):
                if stride == 1:
                    patch = x[ky:ky + TH, kx:kx + Wo, :]
                else:
                    patch = x[ky // 2:ky // 2 + TH, ky % 2,
                              kx // 2:kx // 2 + Wo,
                              (kx % 2) * C:(kx % 2) * C + C]
                acc = acc + patch.astype(jnp.float32) * w_all[ky * k + kx]

        y = acc * s_ref[...] + b_ref[...]
        y = _apply_act(y, pre_act)

        if use_se:
            # Squeeze-Excite fused in the epilogue (single row-tile blocks only):
            # pool -> FC -> ReLU -> FC -> h_sigmoid -> gate.
            pooled = jnp.mean(y.reshape(-1, C), axis=0, keepdims=True)     # (1, C)
            h = jnp.dot(pooled.astype(jnp.bfloat16), w1_ref[...],
                        preferred_element_type=jnp.float32) + b1_ref[...]
            h = jnp.maximum(h, 0.0)
            g = jnp.dot(h.astype(jnp.bfloat16), w2_ref[...],
                        preferred_element_type=jnp.float32) + b2_ref[...]
            g = jnp.clip(g + 3.0, 0.0, 6.0) * (1.0 / 6.0)
            y = y * g.reshape(1, 1, C)

        o_ref[...] = _apply_act(y, post_act).astype(o_ref.dtype)

    return kernel


def _pick_row_tile(Ho, req, cap):
    """Largest TH <= cap that is a multiple of `req`, divides Ho, and leaves T >= 2."""
    best = 0
    top = min(cap, Ho - 1)
    th = req
    while th <= top:
        if Ho % th == 0:
            best = th
        th += req
    if best == 0:
        return Ho, 1
    return best, Ho // best


def _depthwise_block(x, dw_w, dw_s, dw_b, k, stride, pre_act, post_act, se=None):
    """Depthwise conv + BN (+SE): row-tiled grid (batch, row-tiles), halo via BlockSpecs."""
    N, H, W, C = x.shape
    pad = (k - 1) // 2
    use_se = se is not None

    if stride == 1:
        Ho, Wo = H, W
        req = k - 1                 # halo rows per tile; TH must be a multiple of this
    else:
        Ho = (H + 2 * pad - k) // 2 + 1
        Wo = (W + 2 * pad - k) // 2 + 1
        req = max(1, (k - 1) // 2)  # halo split-rows per tile

    # Row-tile selection bounded by a generation-aware VMEM budget.
    per_row_bytes = (24 if stride == 1 else 40) * Wo * C
    cap = max(1, min((_VMEM_LIMIT // 2) // max(per_row_bytes, 1), _ROW_TILE_HARD_CAP))
    if use_se:
        # TODO(synk): a cross-row-tile pooled-sum scratch would lift this single-tile
        # restriction; at df=16 the SE blocks run on small (<= 1/8-resolution) maps.
        TH, T = Ho, 1
    else:
        TH, T = _pick_row_tile(Ho, req, cap)
    has_halo = T > 1

    # TODO(synk): W-on-lane (C-on-sublane) layout for the early C<=72 blocks would cut
    # the 128-lane channel-padding waste at the largest spatial sizes.
    if stride == 1:
        Wp = W + 2 * pad
        xp = jnp.pad(x, ((0, 0), (pad, pad), (pad, pad), (0, 0)))
        if has_halo:
            x_args = [xp, xp]
            x_specs = [
                pl.BlockSpec((None, TH, Wp, C), lambda n, t: (n, t, 0, 0)),
                pl.BlockSpec((None, k - 1, Wp, C),
                             lambda n, t, m=TH // (k - 1): (n, (t + 1) * m, 0, 0)),
            ]
        else:
            x_args = [xp]
            x_specs = [pl.BlockSpec((None, TH + k - 1, Wp, C),
                                    lambda n, t: (n, 0, 0, 0))]
    else:
        hh = req
        Hp2 = max((H + 2 * pad + 1) // 2, T * TH + hh)
        Wp2 = max((W + 2 * pad + 1) // 2, Wo + pad)
        xp = jnp.pad(x, ((0, 0), (pad, 2 * Hp2 - H - pad),
                         (pad, 2 * Wp2 - W - pad), (0, 0)))
        x5 = xp.reshape(N, Hp2, 2, Wp2, 2 * C)      # free reshape: phase fold
        if has_halo:
            x_args = [x5, x5]
            x_specs = [
                pl.BlockSpec((None, TH, 2, Wp2, 2 * C), lambda n, t: (n, t, 0, 0, 0)),
                pl.BlockSpec((None, hh, 2, Wp2, 2 * C),
                             lambda n, t, m=TH // hh: (n, (t + 1) * m, 0, 0, 0)),
            ]
        else:
            x_args = [x5]
            x_specs = [pl.BlockSpec((None, TH + hh, 2, Wp2, 2 * C),
                                    lambda n, t: (n, 0, 0, 0, 0))]

    args = x_args + [dw_w, dw_s, dw_b]
    specs = x_specs + [
        pl.BlockSpec((k * k, C), lambda n, t: (0, 0)),
        pl.BlockSpec((1, C), lambda n, t: (0, 0)),
        pl.BlockSpec((1, C), lambda n, t: (0, 0)),
    ]
    if use_se:
        w1, b1, w2, b2 = se
        Cr = w1.shape[1]
        args += [w1, b1, w2, b2]
        specs += [
            pl.BlockSpec((C, Cr), lambda n, t: (0, 0)),
            pl.BlockSpec((1, Cr), lambda n, t: (0, 0)),
            pl.BlockSpec((Cr, C), lambda n, t: (0, 0)),
            pl.BlockSpec((1, C), lambda n, t: (0, 0)),
        ]

    kernel = _make_dw_kernel(k, stride, use_se, has_halo, pre_act, post_act)
    cost = pl.CostEstimate(
        flops=int(2 * N * Ho * Wo * C * (k * k + 8)),
        transcendentals=0,
        bytes_accessed=int(2 * N * C * (H * W + Ho * Wo) + 4 * k * k * C),
    )
    return pl.pallas_call(
        kernel,
        out_shape=jax.ShapeDtypeStruct((N, Ho, Wo, C), jnp.bfloat16),
        grid=(N, T),
        in_specs=specs,
        out_specs=pl.BlockSpec((None, TH, Wo, C), lambda n, t: (n, t, 0, 0)),
        compiler_params=pltpu.CompilerParams(
            dimension_semantics=("parallel", "parallel"),
            vmem_limit_bytes=_VMEM_LIMIT),
        cost_estimate=cost,
    )(*args)


def _depthwise_ref(x, dw_w, dw_s, dw_b, k, stride, pre_act, post_act, se=None):
    """Plain-XLA reference for the depthwise(+SE) primitive (same cast points)."""
    N, H, W, C = x.shape
    pad = (k - 1) // 2
    xp = jnp.pad(x.astype(jnp.float32), ((0, 0), (pad, pad), (pad, pad), (0, 0)))
    if stride == 1:
        Ho, Wo = H, W
    else:
        Ho = (H + 2 * pad - k) // 2 + 1
        Wo = (W + 2 * pad - k) // 2 + 1
    w = dw_w.astype(jnp.float32)
    acc = jnp.zeros((N, Ho, Wo, C), jnp.float32)
    for ky in range(k):
        for kx in range(k):
            patch = xp[:, ky:ky + stride * (Ho - 1) + 1:stride,
                       kx:kx + stride * (Wo - 1) + 1:stride, :]
            acc = acc + patch * w[ky * k + kx]
    y = acc * dw_s.reshape(1, 1, 1, C) + dw_b.reshape(1, 1, 1, C)
    y = _apply_act(y, pre_act)
    if se is not None:
        w1, b1, w2, b2 = se
        pooled = jnp.mean(y, axis=(1, 2))                                 # (N, C)
        h = jnp.maximum(pooled @ w1.astype(jnp.float32) + b1, 0.0)
        g = jnp.clip(h @ w2.astype(jnp.float32) + b2 + 3.0, 0.0, 6.0) / 6.0
        y = y * g.reshape(N, 1, 1, C)
    return _apply_act(y, post_act)


# ----------------------------------------------------------------------------
# glue: im2col for the dense 3x3 stem conv
# ----------------------------------------------------------------------------
# TODO(synk): replace the im2col materialization with a fused halo-BlockSpec stem
# kernel (last remaining HBM-glue expansion, ~9x the stem input bytes).
def _extract_patches(x, k, stride, pad):
    N, H, W, C = x.shape
    xp = jnp.pad(x, ((0, 0), (pad, pad), (pad, pad), (0, 0)))
    Ho = (H + 2 * pad - k) // stride + 1
    Wo = (W + 2 * pad - k) // stride + 1
    cols = []
    for ky in range(k):
        for kx in range(k):
            cols.append(
                xp[:, ky:ky + stride * (Ho - 1) + 1:stride,
                      kx:kx + stride * (Wo - 1) + 1:stride, :])
    return jnp.concatenate(cols, axis=-1)  # (N, Ho, Wo, k*k*C)


# ----------------------------------------------------------------------------
# MobileNetV3-Large architecture (features[:-1]) + deterministic parameters
# ----------------------------------------------------------------------------
#            k, hidden(exp), out, use_se, use_hs, stride
_CFGS = [
    (3,  16,  16, False, False, 1),
    (3,  64,  24, False, False, 2),
    (3,  72,  24, False, False, 1),
    (5,  72,  40, True,  False, 2),
    (5, 120,  40, True,  False, 1),
    (5, 120,  40, True,  False, 1),
    (3, 240,  80, False, True,  2),
    (3, 200,  80, False, True,  1),
    (3, 184,  80, False, True,  1),
    (3, 184,  80, False, True,  1),
    (3, 480, 112, True,  True,  1),
    (3, 672, 112, True,  True,  1),
    (5, 672, 160, True,  True,  2),   # stride set to 1 by _nostride_dilate (df=16)
    (5, 960, 160, True,  True,  1),
    (5, 960, 160, True,  True,  1),
]


def _make_divisible(v, divisor=8, min_value=None):
    if min_value is None:
        min_value = divisor
    new_v = max(min_value, int(v + divisor / 2) // divisor * divisor)
    if new_v < 0.9 * v:
        new_v += divisor
    return new_v


class _ParamGen:
    def __init__(self, key):
        self._key = key
        self._i = 0

    def _next(self):
        self._i += 1
        return jax.random.fold_in(self._key, self._i)

    def conv(self, shape, fan_in):
        return jax.random.normal(self._next(), shape, jnp.float32) / np.sqrt(float(fan_in))

    def lin_bias(self, shape):
        return 0.01 * jax.random.normal(self._next(), shape, jnp.float32)

    def bn(self, c, eps=1e-5):
        gamma = 1.0 + 0.1 * jax.random.normal(self._next(), (c,), jnp.float32)
        beta = 0.1 * jax.random.normal(self._next(), (c,), jnp.float32)
        mean = 0.1 * jax.random.normal(self._next(), (c,), jnp.float32)
        var = 1.0 + 0.1 * jnp.abs(jax.random.normal(self._next(), (c,), jnp.float32))
        scale = gamma / jnp.sqrt(var + eps)
        bias = beta - mean * scale
        return scale.reshape(1, c), bias.reshape(1, c)


def init_params(key, downsample_factor=16):
    gen = _ParamGen(key)
    params = {}

    # stem: Conv2d(3, 16, 3, stride=2, pad=1, bias=False) + BN + h_swish
    cout_p = _pad128(16)
    w = _pad_to(gen.conv((27, 16), 27), (32, cout_p)).astype(jnp.bfloat16)  # K 27->32
    s, b = gen.bn(16)
    params["stem"] = {"w": w, "s": _pad_to(s, (1, cout_p)), "b": _pad_to(b, (1, cout_p))}

    strides = [c[5] for c in _CFGS]
    if downsample_factor == 16:
        strides[12] = 1  # features[13] dw conv: (2,2) -> (1,1); 5x5 so no dilation change
    # TODO(synk): downsample_factor==8 would additionally require dilated 3x3 depthwise
    # convs for features[8:13]; only the default df=16 path is implemented here.

    blocks = []
    inp = 16
    for i, (k, hidden, out_c, use_se, use_hs, orig_s) in enumerate(_CFGS):
        inp_p, hid_p, out_p = _pad128(inp), _pad128(hidden), _pad128(out_c)
        p = {}
        expand = (inp != hidden)
        if expand:
            p["pw1_w"] = _pad_to(gen.conv((inp, hidden), inp), (inp_p, hid_p)).astype(jnp.bfloat16)
            s1, b1 = gen.bn(hidden)
            p["pw1_s"] = _pad_to(s1, (1, hid_p))
            p["pw1_b"] = _pad_to(b1, (1, hid_p))
        p["dw_w"] = _pad_to(gen.conv((k * k, hidden), k * k), (k * k, hid_p)).astype(jnp.bfloat16)
        sd, bd = gen.bn(hidden)
        p["dw_s"] = _pad_to(sd, (1, hid_p))
        p["dw_b"] = _pad_to(bd, (1, hid_p))
        if use_se:
            sq = _make_divisible(hidden // 4, 8)
            sq_p = _pad128(sq)
            p["se_w1"] = _pad_to(gen.conv((hidden, sq), hidden), (hid_p, sq_p)).astype(jnp.bfloat16)
            p["se_b1"] = _pad_to(gen.lin_bias((1, sq)), (1, sq_p))
            p["se_w2"] = _pad_to(gen.conv((sq, hidden), sq), (sq_p, hid_p)).astype(jnp.bfloat16)
            p["se_b2"] = _pad_to(gen.lin_bias((1, hidden)), (1, hid_p))
        p["pw2_w"] = _pad_to(gen.conv((hidden, out_c), hidden), (hid_p, out_p)).astype(jnp.bfloat16)
        s2, b2 = gen.bn(out_c)
        p["pw2_s"] = _pad_to(s2, (1, out_p))
        p["pw2_b"] = _pad_to(b2, (1, out_p))
        # identity flag uses the ORIGINAL stride (fixed at construction time, before
        # _nostride_dilate mutated the conv stride).
        p["cfg"] = dict(k=k, stride=strides[i], use_se=use_se, use_hs=use_hs,
                        expand=expand, out=out_c,
                        identity=(orig_s == 1 and inp == out_c))
        blocks.append(p)
        inp = out_c
    params["blocks"] = blocks
    return params


def _block_forward(x, p):
    c = p["cfg"]
    k, stride = c["k"], c["stride"]
    act = "hswish" if c["use_hs"] else "relu"
    res = x if c["identity"] else None
    se = (p["se_w1"], p["se_b1"], p["se_w2"], p["se_b2"]) if c["use_se"] else None

    if c["expand"]:
        # pw + BN + act -> dw + BN [-> SE -> act | -> act] -> pw-linear + BN (+res)
        y = _pointwise_bn_act(x, p["pw1_w"], p["pw1_s"], p["pw1_b"], act)
        if c["use_se"]:
            y = _depthwise_block(y, p["dw_w"], p["dw_s"], p["dw_b"], k, stride,
                                 pre_act="linear", post_act=act, se=se)
        else:
            y = _depthwise_block(y, p["dw_w"], p["dw_s"], p["dw_b"], k, stride,
                                 pre_act=act, post_act="linear", se=None)
    else:
        # dw + BN + act [-> SE] -> pw-linear + BN (+res)
        y = _depthwise_block(x, p["dw_w"], p["dw_s"], p["dw_b"], k, stride,
                             pre_act=act, post_act="linear", se=se)
    y = _pointwise_bn_act(y, p["pw2_w"], p["pw2_s"], p["pw2_b"], "linear", residual=res)
    return y


def mobilenetv3_large_forward(x_nchw, params):
    """Returns (low_level_features, x) in NCHW, matching the PyTorch module."""
    x = jnp.transpose(x_nchw, (0, 2, 3, 1)).astype(jnp.bfloat16)   # NCHW -> NHWC

    # features[0]: stem conv (im2col glue + Pallas matmul/BN/h_swish kernel)
    st = params["stem"]
    patches = _extract_patches(x, 3, 2, 1)                         # (N,Ho,Wo,27)
    N, Ho, Wo, KC = patches.shape
    patches = jnp.pad(patches, ((0, 0), (0, 0), (0, 0), (0, 32 - KC)))
    y = _matmul_bn_act(patches.reshape(N * Ho * Wo, 32), st["w"], st["s"], st["b"], "hswish")
    x = y.reshape(N, Ho, Wo, st["w"].shape[1])

    low = None
    for i, blk in enumerate(params["blocks"]):
        x = _block_forward(x, blk)
        if i == 2:  # features[:4] = stem + blocks 0..2
            low = x[..., :blk["cfg"]["out"]]                       # drop lane padding

    out = x[..., :params["blocks"][-1]["cfg"]["out"]]              # drop lane padding
    low_nchw = jnp.transpose(low, (0, 3, 1, 2)).astype(jnp.float32)
    out_nchw = jnp.transpose(out, (0, 3, 1, 2)).astype(jnp.float32)
    return low_nchw, out_nchw


# ----------------------------------------------------------------------------
if __name__ == "__main__":
    root = jax.random.PRNGKey(0)

    # --- primitive self-checks: row-tiled / halo / phase-folded depthwise vs XLA ref ---
    ks = jax.random.split(root, 12)
    C = 128
    sc = 1.0 + 0.1 * jax.random.normal(ks[0], (1, C), jnp.float32)
    bi = 0.1 * jax.random.normal(ks[1], (1, C), jnp.float32)

    def _cmp(got, ref):
        np.testing.assert_allclose(np.asarray(got.astype(jnp.float32)),
                                   np.asarray(ref), rtol=5e-2, atol=5e-2)

    # (a) stride-1 3x3, two row tiles + halo
    xa = jax.random.normal(ks[2], (2, 16, 16, C), jnp.float32).astype(jnp.bfloat16)
    wa = (0.2 * jax.random.normal(ks[3], (9, C), jnp.float32)).astype(jnp.bfloat16)
    _cmp(_depthwise_block(xa, wa, sc, bi, 3, 1, "relu", "linear"),
         _depthwise_ref(xa, wa, sc, bi, 3, 1, "relu", "linear"))

    # (b) stride-2 3x3, two row tiles + halo + in-kernel phase decimation
    _cmp(_depthwise_block(xa, wa, sc, bi, 3, 2, "hswish", "linear"),
         _depthwise_ref(xa, wa, sc, bi, 3, 2, "hswish", "linear"))

    # (c) stride-2 5x5 with fused Squeeze-Excite (single-tile SE path)
    xc = jax.random.normal(ks[4], (1, 8, 8, C), jnp.float32).astype(jnp.bfloat16)
    wc = (0.1 * jax.random.normal(ks[5], (25, C), jnp.float32)).astype(jnp.bfloat16)
    se = ((0.1 * jax.random.normal(ks[6], (C, 128), jnp.float32)).astype(jnp.bfloat16),
          0.05 * jax.random.normal(ks[7], (1, 128), jnp.float32),
          (0.1 * jax.random.normal(ks[8], (128, C), jnp.float32)).astype(jnp.bfloat16),
          0.05 * jax.random.normal(ks[9], (1, C), jnp.float32))
    _cmp(_depthwise_block(xc, wc, sc, bi, 5, 2, "linear", "hswish", se=se),
         _depthwise_ref(xc, wc, sc, bi, 5, 2, "linear", "hswish", se=se))

    # --- full backbone ---
    x = jax.random.normal(root, (2, 3, 32, 32), jnp.float32)   # small NCHW input
    params = init_params(jax.random.PRNGKey(0), downsample_factor=16)

    fwd = jax.jit(lambda inp: mobilenetv3_large_forward(inp, params))
    low, out = fwd(x)
    low, out = jax.block_until_ready((low, out))

    assert low.shape == (2, 24, 8, 8), low.shape      # stride-4 low-level features
    assert out.shape == (2, 160, 2, 2), out.shape     # stride-16 deep features (df=16)
    assert bool(jnp.all(jnp.isfinite(low))) and bool(jnp.all(jnp.isfinite(out)))
    print("KERNEL_OK")
</pallas_src>

<mosaic_0001>
module attributes {stable_mosaic.version = 11 : i64} {
  func.func @kernel(%arg0: i32, %arg1: i32, %arg2: memref<1x8x18x128xbf16, #tpu.memory_space<vmem>>, %arg3: memref<1x2x18x128xbf16, #tpu.memory_space<vmem>>, %arg4: memref<9x128xbf16, #tpu.memory_space<vmem>>, %arg5: memref<1x128xf32, #tpu.memory_space<vmem>>, %arg6: memref<1x128xf32, #tpu.memory_space<vmem>>, %arg7: memref<1x8x16x128xbf16, #tpu.memory_space<vmem>>) attributes {dimension_semantics = [#tpu.dimension_semantics<parallel>, #tpu.dimension_semantics<parallel>], iteration_bounds = array<i64: 2, 2>, scalar_prefetch = 0 : i64, scratch_operands = 0 : i64, tpu.core_type = #tpu.core_type<tc>, window_params = [{transform_indices = @transform_0, window_bounds = array<i64: 1, 8, 18, 128>}, {transform_indices = @transform_1, window_bounds = array<i64: 1, 2, 18, 128>}, {pipeline_mode = #tpu.pipeline_mode<synchronous>, transform_indices = @transform_2, window_bounds = array<i64: 9, 128>}, {pipeline_mode = #tpu.pipeline_mode<synchronous>, transform_indices = @transform_3, window_bounds = array<i64: 1, 128>}, {pipeline_mode = #tpu.pipeline_mode<synchronous>, transform_indices = @transform_4, window_bounds = array<i64: 1, 128>}, {transform_indices = @transform_5, window_bounds = array<i64: 1, 8, 16, 128>}]} {
    %c0 = arith.constant 0 : index
    %c0_0 = arith.constant 0 : index
    %c0_1 = arith.constant 0 : index
    %c0_2 = arith.constant 0 : index
    %0 = vector.load %arg2[%c0, %c0_0, %c0_1, %c0_2] : memref<1x8x18x128xbf16, #tpu.memory_space<vmem>>, vector<1x8x18x128xbf16>
    %1 = vector.shape_cast %0 : vector<1x8x18x128xbf16> to vector<8x18x128xbf16>
    %c0_3 = arith.constant 0 : index
    %c0_4 = arith.constant 0 : index
    %c0_5 = arith.constant 0 : index
    %c0_6 = arith.constant 0 : index
    %2 = vector.load %arg3[%c0_3, %c0_4, %c0_5, %c0_6] : memref<1x2x18x128xbf16, #tpu.memory_space<vmem>>, vector<1x2x18x128xbf16>
    %3 = vector.shape_cast %2 : vector<1x2x18x128xbf16> to vector<2x18x128xbf16>
    %4 = tpu.concatenate %1, %3 in 0 : vector<8x18x128xbf16>, vector<2x18x128xbf16> -> vector<10x18x128xbf16>
    %c0_7 = arith.constant 0 : index
    %c0_8 = arith.constant 0 : index
    %5 = vector.load %arg4[%c0_7, %c0_8] : memref<9x128xbf16, #tpu.memory_space<vmem>>, vector<9x128xbf16>
    %6 = arith.extf %5 : vector<9x128xbf16> to vector<9x128xf32>
    %cst = arith.constant 0.000000e+00 : f32
    %7 = vector.broadcast %cst : f32 to vector<8x16x128xf32>
    %8 = vector.extract_strided_slice %4 {offsets = [0, 0, 0], sizes = [8, 16, 128], strides = [1, 1, 1]} : vector<10x18x128xbf16> to vector<8x16x128xbf16>
    %9 = arith.extf %8 : vector<8x16x128xbf16> to vector<8x16x128xf32>
    %10 = vector.extract_strided_slice %6 {offsets = [0, 0], sizes = [1, 128], strides = [1, 1]} : vector<9x128xf32> to vector<1x128xf32>
    %11 = vector.shape_cast %10 : vector<1x128xf32> to vector<128xf32>
    %12 = vector.shape_cast %11 : vector<128xf32> to vector<1x1x128xf32>
    %13 = vector.broadcast %12 : vector<1x1x128xf32> to vector<8x16x128xf32>
    %14 = arith.mulf %9, %13 : vector<8x16x128xf32>
    %15 = arith.addf %7, %14 : vector<8x16x128xf32>
    %16 = vector.extract_strided_slice %4 {offsets = [0, 1, 0], sizes = [8, 16, 128], strides = [1, 1, 1]} : vector<10x18x128xbf16> to vector<8x16x128xbf16>
    %17 = arith.extf %16 : vector<8x16x128xbf16> to vector<8x16x128xf32>
    %18 = vector.extract_strided_slice %6 {offsets = [1, 0], sizes = [1, 128], strides = [1, 1]} : vector<9x128xf32> to vector<1x128xf32>
    %19 = vector.shape_cast %18 : vector<1x128xf32> to vector<128xf32>
    %20 = vector.shape_cast %19 : vector<128xf32> to vector<1x1x128xf32>
    %21 = vector.broadcast %20 : vector<1x1x128xf32> to vector<8x16x128xf32>
    %22 = arith.mulf %17, %21 : vector<8x16x128xf32>
    %23 = arith.addf %15, %22 : vector<8x16x128xf32>
    %24 = vector.extract_strided_slice %4 {offsets = [0, 2, 0], sizes = [8, 16, 128], strides = [1, 1, 1]} : vector<10x18x128xbf16> to vector<8x16x128xbf16>
    %25 = arith.extf %24 : vector<8x16x128xbf16> to vector<8x16x128xf32>
    %26 = vector.extract_strided_slice %6 {offsets = [2, 0], sizes = [1, 128], strides = [1, 1]} : vector<9x128xf32> to vector<1x128xf32>
    %27 = vector.shape_cast %26 : vector<1x128xf32> to vector<128xf32>
    %28 = vector.shape_cast %27 : vector<128xf32> to vector<1x1x128xf32>
    %29 = vector.broadcast %28 : vector<1x1x128xf32> to vector<8x16x128xf32>
    %30 = arith.mulf %25, %29 : vector<8x16x128xf32>
    %31 = arith.addf %23, %30 : vector<8x16x128xf32>
    %32 = vector.extract_strided_slice %4 {offsets = [1, 0, 0], sizes = [8, 16, 128], strides = [1, 1, 1]} : vector<10x18x128xbf16> to vector<8x16x128xbf16>
    %33 = arith.extf %32 : vector<8x16x128xbf16> to vector<8x16x128xf32>
    %34 = vector.extract_strided_slice %6 {offsets = [3, 0], sizes = [1, 128], strides = [1, 1]} : vector<9x128xf32> to vector<1x128xf32>
    %35 = vector.shape_cast %34 : vector<1x128xf32> to vector<128xf32>
    %36 = vector.shape_cast %35 : vector<128xf32> to vector<1x1x128xf32>
    %37 = vector.broadcast %36 : vector<1x1x128xf32> to vector<8x16x128xf32>
    %38 = arith.mulf %33, %37 : vector<8x16x128xf32>
    %39 = arith.addf %31, %38 : vector<8x16x128xf32>
    %40 = vector.extract_strided_slice %4 {offsets = [1, 1, 0], sizes = [8, 16, 128], strides = [1, 1, 1]} : vector<10x18x128xbf16> to vector<8x16x128xbf16>
    %41 = arith.extf %40 : vector<8x16x128xbf16> to vector<8x16x128xf32>
    %42 = vector.extract_strided_slice %6 {offsets = [4, 0], sizes = [1, 128], strides = [1, 1]} : vector<9x128xf32> to vector<1x128xf32>
    %43 = vector.shape_cast %42 : vector<1x128xf32> to vector<128xf32>
    %44 = vector.shape_cast %43 : vector<128xf32> to vector<1x1x128xf32>
    %45 = vector.broadcast %44 : vector<1x1x128xf32> to vector<8x16x128xf32>
    %46 = arith.mulf %41, %45 : vector<8x16x128xf32>
    %47 = arith.addf %39, %46 : vector<8x16x128xf32>
    %48 = vector.extract_strided_slice %4 {offsets = [1, 2, 0], sizes = [8, 16, 128], strides = [1, 1, 1]} : vector<10x18x128xbf16> to vector<8x16x128xbf16>
    %49 = arith.extf %48 : vector<8x16x128xbf16> to vector<8x16x128xf32>
    %50 = vector.extract_strided_slice %6 {offsets = [5, 0], sizes = [1, 128], strides = [1, 1]} : vector<9x128xf32> to vector<1x128xf32>
    %51 = vector.shape_cast %50 : vector<1x128xf32> to vector<128xf32>
    %52 = vector.shape_cast %51 : vector<128xf32> to vector<1x1x128xf32>
    %53 = vector.broadcast %52 : vector<1x1x128xf32> to vector<8x16x128xf32>
    %54 = arith.mulf %49, %53 : vector<8x16x128xf32>
    %55 = arith.addf %47, %54 : vector<8x16x128xf32>
    %56 = vector.extract_strided_slice %4 {offsets = [2, 0, 0], sizes = [8, 16, 128], strides = [1, 1, 1]} : vector<10x18x128xbf16> to vector<8x16x128xbf16>
    %57 = arith.extf %56 : vector<8x16x128xbf16> to vector<8x16x128xf32>
    %58 = vector.extract_strided_slice %6 {offsets = [6, 0], sizes = [1, 128], strides = [1, 1]} : vector<9x128xf32> to vector<1x128xf32>
    %59 = vector.shape_cast %58 : vector<1x128xf32> to vector<128xf32>
    %60 = vector.shape_cast %59 : vector<128xf32> to vector<1x1x128xf32>
    %61 = vector.broadcast %60 : vector<1x1x128xf32> to vector<8x16x128xf32>
    %62 = arith.mulf %57, %61 : vector<8x16x128xf32>
    %63 = arith.addf %55, %62 : vector<8x16x128xf32>
    %64 = vector.extract_strided_slice %4 {offsets = [2, 1, 0], sizes = [8, 16, 128], strides = [1, 1, 1]} : vector<10x18x128xbf16> to vector<8x16x128xbf16>
    %65 = arith.extf %64 : vector<8x16x128xbf16> to vector<8x16x128xf32>
    %66 = vector.extract_strided_slice %6 {offsets = [7, 0], sizes = [1, 128], strides = [1, 1]} : vector<9x128xf32> to vector<1x128xf32>
    %67 = vector.shape_cast %66 : vector<1x128xf32> to vector<128xf32>
    %68 = vector.shape_cast %67 : vector<128xf32> to vector<1x1x128xf32>
    %69 = vector.broadcast %68 : vector<1x1x128xf32> to vector<8x16x128xf32>
    %70 = arith.mulf %65, %69 : vector<8x16x128xf32>
    %71 = arith.addf %63, %70 : vector<8x16x128xf32>
    %72 = vector.extract_strided_slice %4 {offsets = [2, 2, 0], sizes = [8, 16, 128], strides = [1, 1, 1]} : vector<10x18x128xbf16> to vector<8x16x128xbf16>
    %73 = arith.extf %72 : vector<8x16x128xbf16> to vector<8x16x128xf32>
    %74 = vector.extract_strided_slice %6 {offsets = [8, 0], sizes = [1, 128], strides = [1, 1]} : vector<9x128xf32> to vector<1x128xf32>
    %75 = vector.shape_cast %74 : vector<1x128xf32> to vector<128xf32>
    %76 = vector.shape_cast %75 : vector<128xf32> to vector<1x1x128xf32>
    %77 = vector.broadcast %76 : vector<1x1x128xf32> to vector<8x16x128xf32>
    %78 = arith.mulf %73, %77 : vector<8x16x128xf32>
    %79 = arith.addf %71, %78 : vector<8x16x128xf32>
    %c0_9 = arith.constant 0 : index
    %c0_10 = arith.constant 0 : index
    %80 = vector.load %arg5[%c0_9, %c0_10] : memref<1x128xf32, #tpu.memory_space<vmem>>, vector<1x128xf32>
    %81 = vector.shape_cast %80 : vector<1x128xf32> to vector<1x1x128xf32>
    %82 = vector.broadcast %81 : vector<1x1x128xf32> to vector<8x16x128xf32>
    %83 = arith.mulf %79, %82 : vector<8x16x128xf32>
    %c0_11 = arith.constant 0 : index
    %c0_12 = arith.constant 0 : index
    %84 = vector.load %arg6[%c0_11, %c0_12] : memref<1x128xf32, #tpu.memory_space<vmem>>, vector<1x128xf32>
    %85 = vector.shape_cast %84 : vector<1x128xf32> to vector<1x1x128xf32>
    %86 = vector.broadcast %85 : vector<1x1x128xf32> to vector<8x16x128xf32>
    %87 = arith.addf %83, %86 : vector<8x16x128xf32>
    %cst_13 = arith.constant 0.000000e+00 : f32
    %88 = vector.broadcast %cst_13 : f32 to vector<8x16x128xf32>
    %89 = arith.maximumf %87, %88 : vector<8x16x128xf32>
    %90 = arith.truncf %89 : vector<8x16x128xf32> to vector<8x16x128xbf16>
    %c0_14 = arith.constant 0 : index
    %c0_15 = arith.constant 0 : index
    %c0_16 = arith.constant 0 : index
    %c0_17 = arith.constant 0 : index
    %91 = vector.load %arg7[%c0_14, %c0_15, %c0_16, %c0_17] : memref<1x8x16x128xbf16, #tpu.memory_space<vmem>>, vector<1x8x16x128xbf16>
    %92 = vector.shape_cast %91 : vector<1x8x16x128xbf16> to vector<8x16x128xbf16>
    %93 = vector.shape_cast %90 : vector<8x16x128xbf16> to vector<1x8x16x128xbf16>
    tpu.vector_store %arg7[%c0_14, %c0_15, %c0_16, %c0_17], %93 {strides = array<i32>} : memref<1x8x16x128xbf16, #tpu.memory_space<vmem>>, vector<1x8x16x128xbf16>,
    return
  }
  func.func @transform_0(%arg0: i32, %arg1: i32) -> (i32, i32, i32, i32) {
    %c0_i32 = arith.constant 0 : i32
    %c0_i32_0 = arith.constant 0 : i32
    %c0_i32_1 = arith.constant 0 : i32
    return %arg0, %arg1, %c0_i32, %c0_i32_0 : i32, i32, i32, i32
  }
  func.func @transform_1(%arg0: i32, %arg1: i32) -> (i32, i32, i32, i32) {
    %c1_i32 = arith.constant 1 : i32
    %0 = arith.addi %arg1, %c1_i32 : i32
    %c4_i32 = arith.constant 4 : i32
    %1 = arith.muli %0, %c4_i32 : i32
    %c0_i32 = arith.constant 0 : i32
    %c0_i32_0 = arith.constant 0 : i32
    %c0_i32_1 = arith.constant 0 : i32
    return %arg0, %1, %c0_i32, %c0_i32_0 : i32, i32, i32, i32
  }
  func.func @transform_2(%arg0: i32, %arg1: i32) -> (i32, i32) {
    %c0_i32 = arith.constant 0 : i32
    %c0_i32_0 = arith.constant 0 : i32
    %c0_i32_1 = arith.constant 0 : i32
    return %c0_i32, %c0_i32_0 : i32, i32
  }
  func.func @transform_3(%arg0: i32, %arg1: i32) -> (i32, i32) {
    %c0_i32 = arith.constant 0 : i32
    %c0_i32_0 = arith.constant 0 : i32
    %c0_i32_1 = arith.constant 0 : i32
    return %c0_i32, %c0_i32_0 : i32, i32
  }
  func.func @transform_4(%arg0: i32, %arg1: i32) -> (i32, i32) {
    %c0_i32 = arith.constant 0 : i32
    %c0_i32_0 = arith.constant 0 : i32
    %c0_i32_1 = arith.constant 0 : i32
    return %c0_i32, %c0_i32_0 : i32, i32
  }
  func.func @transform_5(%arg0: i32, %arg1: i32) -> (i32, i32, i32, i32) {
    %c0_i32 = arith.constant 0 : i32
    %c0_i32_0 = arith.constant 0 : i32
    %c0_i32_1 = arith.constant 0 : i32
    return %arg0, %arg1, %c0_i32, %c0_i32_0 : i32, i32, i32, i32
  }
}

</mosaic_0001>

<llo_original>
// kernel: tpu_custom_call.1
$region0: #{tpu_custom_call.1}
  #allocation0 [shape = 'u32[]', space=smem, size = 0x4, offset = 0x4, fixed_abs, tag = 'smem constant byte address 0x4 - core index']
  #allocation1 [shape = 'u32[144,128]{1,0:T(1,128)}', space=vmem, size = 0x12000, scoped, tag = 'internal scratch']
  %s0 = inlined_call_operand.vmem [shape: bf16[2,18,18,128], index: 0, kind: input, shape index: {}]
  %s1 = inlined_call_operand.vmem [shape: bf16[2,18,18,128], index: 1, kind: input, shape index: {}]
  %s2 = inlined_call_operand.vmem [shape: bf16[9,128], index: 2, kind: input, shape index: {}]
  %s3 = inlined_call_operand.vmem [shape: f32[1,128], index: 3, kind: input, shape index: {}]
  %s4 = inlined_call_operand.vmem [shape: f32[1,128], index: 4, kind: input, shape index: {}]
  %s5 = inlined_call_operand.hbm [shape: bf16[2,16,16,128], index: 5, kind: output, shape index: {}]
  %s6 = sld [smem:[#allocation0]]
  $region53: #{tpu_custom_call.1} parent=0
    _
  %s8 = ssub.s32 1, %s6
  %s9 = scalar_select 0, %s8, %s6
  $region1: #{tpu_custom_call.1} parent=0
    #allocation2 [shape = 'u8[65536]{0}', space=vmem, size = 0x10000, scoped, tag = 'output window, operand 0']
    #allocation3 [shape = 's32[2]{0}', space=sflag, size = 0x8, scoped, tag = 'scoped memory for tpu_custom_call.1']
    %10 = vsyncpa [#allocation3], 0
    %s11 = scalar_lea.sflag [#allocation3], 1
    %12 = vsyncpa %s11, 0
    loop: start=0, step=1, limit=6
    $region2: #{tpu_custom_call.1} parent=1 // loop_pre_header
      _
    $region3: #{tpu_custom_call.1} parent=1 // loop_header
      %s14 = sphi 0, %s18
      %p15 = scmp.ge.s32.totalorder %s14, 6
      %s21 = sphi 0, %s33
      %s22 = sphi 0, %s29
      %s23 = sphi 0, %s21
      %s24 = sphi 0, %s22
      %s25 = sphi 0, %s23
      %s26 = sphi 0, %s24
      %s38 = sphi 0, %s40
      %s41 = sphi 0, %s38
      %s42 = sphi 0, %s41
      %s58 = sphi 0, %s42
      %s70 = sphi 0, %s72
      %s73 = sphi 0, %s70
      %s74 = sphi 0, %s73
      %s90 = sphi 0, %s74
      %s94 = sphi 0, %s94
      %s96 = sphi 0, %s94
      %s97 = sphi 0, %s96
      %s111 = sphi 0, %s97
      %s115 = sphi 0, %s115
      %s117 = sphi 0, %s115
      %s118 = sphi 0, %s117
      %s132 = sphi 0, %s118
      %s136 = sphi 0, %s136
      %s138 = sphi 0, %s136
      %s139 = sphi 0, %s138
      %s153 = sphi 0, %s139
      %s161 = sphi 0, %s163
      %s164 = sphi 0, %s161
      %s165 = sphi 0, %s164
      %s181 = sphi 0, %s165
    $region4: #{tpu_custom_call.1} parent=1 // loop_header_branch
      %17 = sbr.rel (%p15) target = $region8
    $region5: #{tpu_custom_call.1} parent=1 // loop_body
      %s19 = ssub.s32 %s14, 1
      %s20 = ssub.s32 %s14, 2
      %s27 = sadd.s32 1, %s22
      %p28 = scmp.ge.s32.totalorder %s27, 2
      %s29 = scalar_select %p28, 0, %s27
      %s30 = sadd.s32 1, %s21
      %s31 = scalar_select %p28, %s30, %s21
      %p32 = scmp.ge.s32.totalorder %s31, 2
      %s33 = scalar_select %p32, 0, %s31
      %s34 = ssub.s32 %s21, %s33
      %s35 = ssub.s32 %s22, %s29
      %s36 = sor.u32 %s34, %s35
      %p37 = scmp.eq.s32.totalorder %s36, 0
      %s39 = sadd.s32 %s38, 1
      %s40 = scalar_select %p37, %s38, %s39
      %p43 = pneg %p37
      %p44 = scmp.eq.s32.totalorder %s14, 3
      %p45 = por %p43, %p44
      %p46 = scmp.ne.s32.totalorder %s38, %s41
      %p47 = scmp.eq.s32.totalorder %s14, 0
      %p48 = por %p46, %p47
      %p49 = scmp.ne.s32.totalorder %s38, %s41
      %p50 = scmp.eq.s32.totalorder %s19, 3
      %p51 = por %p49, %p50
      %p52 = scmp.ne.s32.totalorder %s41, %s42
      %p53 = scmp.eq.s32.totalorder %s19, 0
      %p54 = por %p52, %p53
      %p55 = scmp.ne.s32.totalorder %s41, %s42
      %p56 = scmp.eq.s32.totalorder %s20, 3
      %p57 = por %p55, %p56
      %p59 = scmp.ne.s32.totalorder %s42, %s58
      %p60 = scmp.eq.s32.totalorder %s20, 0
      %p61 = por %p59, %p60
      %s62 = sadd.s32 %s22, 1
      %s63 = smul.u32 %s62, 4
      %s64 = sadd.s32 %s29, 1
      %s65 = smul.u32 %s64, 4
      %s66 = ssub.s32 %s21, %s33
      %s67 = ssub.s32 %s63, %s65
      %s68 = sor.u32 %s66, %s67
      %p69 = scmp.eq.s32.totalorder %s68, 0
      %s71 = sadd.s32 %s70, 1
      %s72 = scalar_select %p69, %s70, %s71
      %p75 = pneg %p69
      %p76 = scmp.eq.s32.totalorder %s14, 3
      %p77 = por %p75, %p76
      %p78 = scmp.ne.s32.totalorder %s70, %s73
      %p79 = scmp.eq.s32.totalorder %s14, 0
      %p80 = por %p78, %p79
      %p81 = scmp.ne.s32.totalorder %s70, %s73
      %p82 = scmp.eq.s32.totalorder %s19, 3
      %p83 = por %p81, %p82
      %p84 = scmp.ne.s32.totalorder %s73, %s74
      %p85 = scmp.eq.s32.totalorder %s19, 0
      %p86 = por %p84, %p85
      %p87 = scmp.ne.s32.totalorder %s73, %s74
      %p88 = scmp.eq.s32.totalorder %s20, 3
      %p89 = por %p87, %p88
      %p91 = scmp.ne.s32.totalorder %s74, %s90
      %p92 = scmp.eq.s32.totalorder %s20, 0
      %p93 = por %p91, %p92
      %s95 = sadd.s32 %s94, 1
      %p98 = scmp.eq.s32.totalorder %s14, 3
      %p99 = scmp.ne.s32.totalorder %s94, %s96
      %p100 = scmp.eq.s32.totalorder %s14, 0
      %p101 = por %p99, %p100
      %p102 = scmp.ne.s32.totalorder %s94, %s96
      %p103 = scmp.eq.s32.totalorder %s19, 3
      %p104 = por %p102, %p103
      %p105 = scmp.ne.s32.totalorder %s96, %s97
      %p106 = scmp.eq.s32.totalorder %s19, 0
      %p107 = por %p105, %p106
      %p108 = scmp.ne.s32.totalorder %s96, %s97
      %p109 = scmp.eq.s32.totalorder %s20, 3
      %p110 = por %p108, %p109
      %p112 = scmp.ne.s32.totalorder %s97, %s111
      %p113 = scmp.eq.s32.totalorder %s20, 0
      %p114 = por %p112, %p113
      %s116 = sadd.s32 %s115, 1
      %p119 = scmp.eq.s32.totalorder %s14, 3
      %p120 = scmp.ne.s32.totalorder %s115, %s117
      %p121 = scmp.eq.s32.totalorder %s14, 0
      %p122 = por %p120, %p121
      %p123 = scmp.ne.s32.totalorder %s115, %s117
      %p124 = scmp.eq.s32.totalorder %s19, 3
      %p125 = por %p123, %p124
      %p126 = scmp.ne.s32.totalorder %s117, %s118
      %p127 = scmp.eq.s32.totalorder %s19, 0
      %p128 = por %p126, %p127
      %p129 = scmp.ne.s32.totalorder %s117, %s118
      %p130 = scmp.eq.s32.totalorder %s20, 3
      %p131 = por %p129, %p130
      %p133 = scmp.ne.s32.totalorder %s118, %s132
      %p134 = scmp.eq.s32.totalorder %s20, 0
      %p135 = por %p133, %p134
      %s137 = sadd.s32 %s136, 1
      %p140 = scmp.eq.s32.totalorder %s14, 3
      %p141 = scmp.ne.s32.totalorder %s136, %s138
      %p142 = scmp.eq.s32.totalorder %s14, 0
      %p143 = por %p141, %p142
      %p144 = scmp.ne.s32.totalorder %s136, %s138
      %p145 = scmp.eq.s32.totalorder %s19, 3
      %p146 = por %p144, %p145
      %p147 = scmp.ne.s32.totalorder %s138, %s139
      %p148 = scmp.eq.s32.totalorder %s19, 0
      %p149 = por %p147, %p148
      %p150 = scmp.ne.s32.totalorder %s138, %s139
      %p151 = scmp.eq.s32.totalorder %s20, 3
      %p152 = por %p150, %p151
      %p154 = scmp.ne.s32.totalorder %s139, %s153
      %p155 = scmp.eq.s32.totalorder %s20, 0
      %p156 = por %p154, %p155
      %s157 = ssub.s32 %s21, %s33
      %s158 = ssub.s32 %s22, %s29
      %s159 = sor.u32 %s157, %s158
      %p160 = scmp.eq.s32.totalorder %s159, 0
      %s162 = sadd.s32 %s161, 1
      %s163 = scalar_select %p160, %s161, %s162
      %p166 = pneg %p160
      %p167 = scmp.eq.s32.totalorder %s14, 3
      %p168 = por %p166, %p167
      %p169 = scmp.ne.s32.totalorder %s161, %s164
      %p170 = scmp.eq.s32.totalorder %s14, 0
      %p171 = por %p169, %p170
      %p172 = scmp.ne.s32.totalorder %s161, %s164
      %p173 = scmp.eq.s32.totalorder %s19, 3
      %p174 = por %p172, %p173
      %p175 = scmp.ne.s32.totalorder %s164, %s165
      %p176 = scmp.eq.s32.totalorder %s19, 0
      %p177 = por %p175, %p176
      %p178 = scmp.ne.s32.totalorder %s164, %s165
      %p179 = scmp.eq.s32.totalorder %s20, 3
      %p180 = por %p178, %p179
      %p182 = scmp.ne.s32.totalorder %s165, %s181
      %p183 = scmp.eq.s32.totalorder %s20, 0
      %p184 = por %p182, %p183
      %p185 = scmp.le.s32.totalorder 1, %s14
      %p186 = scmp.lt.s32.totalorder %s14, 5
      %p187 = pnand %p185, %p186
      %p188 = pneg %p187
      // Predicated region
      $region9: #{tpu_custom_call.1} parent=5 // pred_check
        _
      $region10: #{tpu_custom_call.1} parent=5 // pred_check_branch
        %190 = sbr.rel (%p187) target = $region12
      $region11: #{tpu_custom_call.1} parent=5 // pred_region
        %s191 = ssub.s32 %s14, 1
        // Predicated region
        $region13: #{tpu_custom_call.1} parent=11 // pred_check
          %p192 = pneg %p107
        $region14: #{tpu_custom_call.1} parent=11 // pred_check_branch
          %194 = sbr.rel (%p192) target = $region16
        $region15: #{tpu_custom_call.1} parent=11 // pred_region
          _
        $region16: #{tpu_custom_call.1} parent=11 // pred_fallthru
          _
        // Predicated region
        $region17: #{tpu_custom_call.1} parent=11 // pred_check
          %p195 = pneg %p128
        $region18: #{tpu_custom_call.1} parent=11 // pred_check_branch
          %197 = sbr.rel (%p195) target = $region20
        $region19: #{tpu_custom_call.1} parent=11 // pred_region
          _
        $region20: #{tpu_custom_call.1} parent=11 // pred_fallthru
          _
        // Predicated region
        $region21: #{tpu_custom_call.1} parent=11 // pred_check
          %p198 = pneg %p149
        $region22: #{tpu_custom_call.1} parent=11 // pred_check_branch
          %200 = sbr.rel (%p198) target = $region24
        $region23: #{tpu_custom_call.1} parent=11 // pred_region
          _
        $region24: #{tpu_custom_call.1} parent=11 // pred_fallthru
          _
      $region12: #{tpu_custom_call.1} parent=5 // pred_fallthru
        _
      %p201 = scmp.lt.s32.totalorder %s14, 4
      // Predicated region
      $region25: #{tpu_custom_call.1} parent=5 // pred_check
        %p202 = pneg %p201
      $region26: #{tpu_custom_call.1} parent=5 // pred_check_branch
        %204 = sbr.rel (%p202) target = $region28
      $region27: #{tpu_custom_call.1} parent=5 // pred_region
        // Predicated region
        $region29: #{tpu_custom_call.1} parent=27 // pred_check
          %p205 = pneg %p48
        $region30: #{tpu_custom_call.1} parent=27 // pred_check_branch
          %207 = sbr.rel (%p205) target = $region32
        $region31: #{tpu_custom_call.1} parent=27 // pred_region
          %s208 = smul.u32 8, %s22
          %s209 = ssub.s32 18, %s208
          %p210 = scmp.lt.s32.totalorder %s209, 8
          %s211 = scalar_select %p210, %s209, 8
          %s212 = smul.u32 64, %s211
          %s213 = smul.u32 %s212, 3
          %p214 = scmp.lt.s32.totalorder %s21, 1
          %s215 = scalar_select %p214, %s21, 1
          %p216 = scmp.lt.s32.totalorder %s208, 17
          %s217 = scalar_select %p216, %s208, 17
          %s218 = smul.addr %s217, 3
          %s219 = smul.addr %s215, 54
          %s220 = sadd.s32 %s218, %s219
          %s221 = smul.addr %s220, 4
          %s222 = scalar_lea.vmem %s0, %s221
          %s223 = smul.u32 8, %s22
          %s224 = ssub.s32 18, %s223
          %p225 = scmp.lt.s32.totalorder %s224, 8
          %s226 = scalar_select %p225, %s224, 8
          %s227 = smul.u32 64, %s226
          %s228 = smul.u32 %s227, 3
        $region32: #{tpu_custom_call.1} parent=27 // pred_fallthru
          _
        // Predicated region
        $region33: #{tpu_custom_call.1} parent=27 // pred_check
          %p229 = pneg %p80
        $region34: #{tpu_custom_call.1} parent=27 // pred_check_branch
          %231 = sbr.rel (%p229) target = $region36
        $region35: #{tpu_custom_call.1} parent=27 // pred_region
          %s232 = sadd.s32 %s22, 1
          %s233 = smul.u32 %s232, 4
          %s234 = smul.u32 2, %s233
          %p235 = scmp.lt.s32.totalorder %s21, 1
          %s236 = scalar_select %p235, %s21, 1
          %p237 = scmp.lt.s32.totalorder %s234, 17
          %s238 = scalar_select %p237, %s234, 17
          %s239 = smul.addr %s238, 3
          %s240 = smul.addr %s236, 54
          %s241 = sadd.s32 %s239, %s240
          %s242 = smul.addr %s241, 4
          %s243 = scalar_lea.vmem %s1, %s242
          %s244 = sadd.s32 %s22, 1
          %s245 = smul.u32 %s244, 4
          %s246 = smul.u32 2, %s245
        $region36: #{tpu_custom_call.1} parent=27 // pred_fallthru
          _
      $region28: #{tpu_custom_call.1} parent=5 // pred_fallthru
        _
      %p247 = scmp.le.s32.totalorder 1, %s14
      %p248 = scmp.lt.s32.totalorder %s14, 5
      %p249 = pnand %p247, %p248
      %p250 = pneg %p249
      // Predicated region
      $region37: #{tpu_custom_call.1} parent=5 // pred_check
        _
      $region38: #{tpu_custom_call.1} parent=5 // pred_check_branch
        %252 = sbr.rel (%p249) target = $region40
      $region39: #{tpu_custom_call.1} parent=5 // pred_region
        %s253 = ssub.s32 %s14, 1
        %s254 = smul.u32 8, %s24
        %s255 = ssub.s32 18, %s254
        %p256 = scmp.lt.s32.totalorder %s255, 8
        %s257 = scalar_select %p256, %s255, 8
        %s258 = smul.u32 64, %s257
        %s259 = smul.u32 %s258, 3
        %p260 = scmp.lt.s32.totalorder %s23, 1
        %s261 = scalar_select %p260, %s23, 1
        %p262 = scmp.lt.s32.totalorder %s254, 17
        %s263 = scalar_select %p262, %s254, 17
        %s264 = smul.addr %s263, 3
        %s265 = smul.addr %s261, 54
        %s266 = sadd.s32 %s264, %s265
        %s267 = smul.addr %s266, 4
        %s268 = scalar_lea.vmem %s0, %s267
        %p269 = pneg %p54
        %p270 = pneg %p51
        %s271 = sadd.s32 %s24, 1
        %s272 = smul.u32 %s271, 4
        %s273 = smul.u32 2, %s272
        %p274 = scmp.lt.s32.totalorder %s23, 1
        %s275 = scalar_select %p274, %s23, 1
        %p276 = scmp.lt.s32.totalorder %s273, 17
        %s277 = scalar_select %p276, %s273, 17
        %s278 = smul.addr %s277, 3
        %s279 = smul.addr %s275, 54
        %s280 = sadd.s32 %s278, %s279
        %s281 = smul.addr %s280, 4
        %s282 = scalar_lea.vmem %s1, %s281
        %p283 = pneg %p86
        %p284 = pneg %p83
        %p285 = pneg %p107
        %p286 = pneg %p104
        %p287 = pneg %p128
        %p288 = pneg %p125
        %p289 = pneg %p149
        %p290 = pneg %p146
        %p291 = pneg %p177
        %p292 = pneg %p174
        %s293 = sand.u32 %s164, 1
        %s294 = scalar_lea.sflag [#allocation3], %s293
        %s295 = sand.u32 %s164, 1
        %s296 = smul.addr %s295, 64
        %s297 = scalar_lea.vmem [#allocation2], %s296
        %s298 = smul.u32 8, %s24
        %s299 = ssub.s32 18, %s298
        %p300 = scmp.lt.s32.totalorder %s299, 8
        %s301 = scalar_select %p300, %s299, 8
        %s302 = smul.u32 64, %s301
        %s303 = smul.u32 %s302, 3
        %p304 = scmp.lt.s32.totalorder %s23, 1
        %s305 = scalar_select %p304, %s23, 1
        %p306 = scmp.lt.s32.totalorder %s298, 17
        %s307 = scalar_select %p306, %s298, 17
        %s308 = smul.addr %s307, 3
        %s309 = smul.addr %s305, 54
        %s310 = sadd.s32 %s308, %s309
        %s311 = smul.addr %s310, 4
        %s312 = scalar_lea.vmem %s0, %s311
        %s313 = smul.u32 8, %s24
        %s314 = ssub.s32 18, %s313
        %p315 = scmp.lt.s32.totalorder %s314, 8
        %s316 = scalar_select %p315, %s314, 8
        %s317 = smul.u32 64, %s316
        %s318 = smul.u32 %s317, 3
        %s319 = sadd.s32 %s24, 1
        %s320 = smul.u32 %s319, 4
        %s321 = smul.u32 2, %s320
        %p322 = scmp.lt.s32.totalorder %s23, 1
        %s323 = scalar_select %p322, %s23, 1
        %p324 = scmp.lt.s32.totalorder %s321, 17
        %s325 = scalar_select %p324, %s321, 17
        %s326 = smul.addr %s325, 3
        %s327 = smul.addr %s323, 54
        %s328 = sadd.s32 %s326, %s327
        %s329 = smul.addr %s328, 4
        %s330 = scalar_lea.vmem %s1, %s329
        %s331 = sadd.s32 %s24, 1
        %s332 = smul.u32 %s331, 4
        %s333 = smul.u32 2, %s332
        %s334 = smul.u32 8, %s24
        %v335 = vld [vmem:[%s312] sm:$0xf]
        %v336 = vld [vmem:[%s312 + $0x4] sm:$0xf]
        %v337 = vld [vmem:[%s312 + $0x8] sm:$0x1]
        %v338 = vld [vmem:[%s312 + $0xc] sm:$0xf]
        %v339 = vld [vmem:[%s312 + $0x10] sm:$0xf]
        %v340 = vld [vmem:[%s312 + $0x14] sm:$0x1]
        %v341 = vld [vmem:[%s312 + $0x18] sm:$0xf]
        %v342 = vld [vmem:[%s312 + $0x1c] sm:$0xf]
        %v343 = vld [vmem:[%s312 + $0x20] sm:$0x1]
        %v344 = vld [vmem:[%s312 + $0x24] sm:$0xf]
        %v345 = vld [vmem:[%s312 + $0x28] sm:$0xf]
        %v346 = vld [vmem:[%s312 + $0x2c] sm:$0x1]
        %v347 = vld [vmem:[%s312 + $0x30] sm:$0xf]
        %v348 = vld [vmem:[%s312 + $0x34] sm:$0xf]
        %v349 = vld [vmem:[%s312 + $0x38] sm:$0x1]
        %v350 = vld [vmem:[%s312 + $0x3c] sm:$0xf]
        %v351 = vld [vmem:[%s312 + $0x40] sm:$0xf]
        %v352 = vld [vmem:[%s312 + $0x44] sm:$0x1]
        %v353 = vld [vmem:[%s312 + $0x48] sm:$0xf]
        %v354 = vld [vmem:[%s312 + $0x4c] sm:$0xf]
        %v355 = vld [vmem:[%s312 + $0x50] sm:$0x1]
        %v356 = vld [vmem:[%s312 + $0x54] sm:$0xf]
        %v357 = vld [vmem:[%s312 + $0x58] sm:$0xf]
        %v358 = vld [vmem:[%s312 + $0x5c] sm:$0x1]
        %v359 = vld [vmem:[%s330] sm:$0xf]
        %v360 = vld [vmem:[%s330 + $0x4] sm:$0xf]
        %v361 = vld [vmem:[%s330 + $0x8] sm:$0x1]
        %v362 = vld [vmem:[%s330 + $0xc] sm:$0xf]
        %v363 = vld [vmem:[%s330 + $0x10] sm:$0xf]
        %v364 = vld [vmem:[%s330 + $0x14] sm:$0x1]
        %v365 = vld [vmem:[%s2] sm:$0xf]
        %v366 = vld [vmem:[%s2 + $0x4] sm:$0x1]
        %v367 = vunpack.c.l.bf16 %v365
        %v368 = vunpack.c.l.bf16 %v366
        %v369 = vunpack.c.l.bf16 %v335
        %v370 = vunpack.c.l.bf16 %v336
        %v371 = vunpack.c.l.bf16 %v338
        %v372 = vunpack.c.l.bf16 %v339
        %v373 = vunpack.c.l.bf16 %v341
        %v374 = vunpack.c.l.bf16 %v342
        %v375 = vunpack.c.l.bf16 %v344
        %v376 = vunpack.c.l.bf16 %v345
        %v377 = vunpack.c.l.bf16 %v347
        %v378 = vunpack.c.l.bf16 %v348
        %v379 = vunpack.c.l.bf16 %v350
        %v380 = vunpack.c.l.bf16 %v351
        %v381 = vunpack.c.l.bf16 %v353
        %v382 = vunpack.c.l.bf16 %v354
        %v383 = vunpack.c.l.bf16 %v356
        %v384 = vunpack.c.l.bf16 %v357
        %v385 = vlaneseq
        %v386 = vshrl.u32 %v385, 7
        %v387 = vsub.s32 0, %v386
        %v388 = vrot.slane %v367, %v387
        %v389 = vmul.f32 %v369, %v388
        %v390 = vmul.f32 %v370, %v388
        %v391 = vmul.f32 %v371, %v388
        %v392 = vmul.f32 %v372, %v388
        %v393 = vmul.f32 %v373, %v388
        %v394 = vmul.f32 %v374, %v388
        %v395 = vmul.f32 %v375, %v388
        %v396 = vmul.f32 %v376, %v388
        %v397 = vmul.f32 %v377, %v388
        %v398 = vmul.f32 %v378, %v388
        %v399 = vmul.f32 %v379, %v388
        %v400 = vmul.f32 %v380, %v388
        %v401 = vmul.f32 %v381, %v388
        %v402 = vmul.f32 %v382, %v388
        %v403 = vmul.f32 %v383, %v388
        %v404 = vmul.f32 %v384, %v388
        %v405 = vadd.f32 %v389, 0.0
        %v406 = vadd.f32 %v390, 0.0
        %v407 = vadd.f32 %v391, 0.0
        %v408 = vadd.f32 %v392, 0.0
        %v409 = vadd.f32 %v393, 0.0
        %v410 = vadd.f32 %v394, 0.0
        %v411 = vadd.f32 %v395, 0.0
        %v412 = vadd.f32 %v396, 0.0
        %v413 = vadd.f32 %v397, 0.0
        %v414 = vadd.f32 %v398, 0.0
        %v415 = vadd.f32 %v399, 0.0
        %v416 = vadd.f32 %v400, 0.0
        %v417 = vadd.f32 %v401, 0.0
        %v418 = vadd.f32 %v402, 0.0
        %v419 = vadd.f32 %v403, 0.0
        %v420 = vadd.f32 %v404, 0.0
        %v421 = vunpack.c.l.bf16 %v337
        %v422 = vunpack.c.l.bf16 %v340
        %v423 = vunpack.c.l.bf16 %v343
        %v424 = vunpack.c.l.bf16 %v346
        %v425 = vunpack.c.l.bf16 %v349
        %v426 = vunpack.c.l.bf16 %v352
        %v427 = vunpack.c.l.bf16 %v355
        %v428 = vunpack.c.l.bf16 %v358
        %v429 = vlaneseq
        %v430 = vshrl.u32 %v429, 7
        %v431 = vsub.s32 1, %v430
        %v432 = vrot.slane %v367, %v431
        %v433 = vmul.f32 %v369, %v432
        %v434 = vmul.f32 %v370, %v432
        %v435 = vmul.f32 %v421, %v432
        %v436 = vmul.f32 %v371, %v432
        %v437 = vmul.f32 %v372, %v432
        %v438 = vmul.f32 %v422, %v432
        %v439 = vmul.f32 %v373, %v432
        %v440 = vmul.f32 %v374, %v432
        %v441 = vmul.f32 %v423, %v432
        %v442 = vmul.f32 %v375, %v432
        %v443 = vmul.f32 %v376, %v432
        %v444 = vmul.f32 %v424, %v432
        %v445 = vmul.f32 %v377, %v432
        %v446 = vmul.f32 %v378, %v432
        %v447 = vmul.f32 %v425, %v432
        %v448 = vmul.f32 %v379, %v432
        %v449 = vmul.f32 %v380, %v432
        %v450 = vmul.f32 %v426, %v432
        %v451 = vmul.f32 %v381, %v432
        %v452 = vmul.f32 %v382, %v432
        %v453 = vmul.f32 %v427, %v432
        %v454 = vmul.f32 %v383, %v432
        %v455 = vmul.f32 %v384, %v432
        %v456 = vmul.f32 %v428, %v432
        %vm481 = vcmask 1046528
        %v482 = vrot.slane %v433, 1
        %v483 = vrot.slane %v434, 1
        %v484 = vsel %vm481, %v482, %v483
        %v485 = vrot.slane %v435, 1
        %v486 = vsel %vm481, %v483, %v485
        %v487 = vrot.slane %v436, 1
        %v488 = vrot.slane %v437, 1
        %v489 = vsel %vm481, %v487, %v488
        %v490 = vrot.slane %v438, 1
        %v491 = vsel %vm481, %v488, %v490
        %v492 = vrot.slane %v439, 1
        %v493 = vrot.slane %v440, 1
        %v494 = vsel %vm481, %v492, %v493
        %v495 = vrot.slane %v441, 1
        %v496 = vsel %vm481, %v493, %v495
        %v497 = vrot.slane %v442, 1
        %v498 = vrot.slane %v443, 1
        %v499 = vsel %vm481, %v497, %v498
        %v500 = vrot.slane %v444, 1
        %v501 = vsel %vm481, %v498, %v500
        %v502 = vrot.slane %v445, 1
        %v503 = vrot.slane %v446, 1
        %v504 = vsel %vm481, %v502, %v503
        %v505 = vrot.slane %v447, 1
        %v506 = vsel %vm481, %v503, %v505
        %v507 = vrot.slane %v448, 1
        %v508 = vrot.slane %v449, 1
        %v509 = vsel %vm481, %v507, %v508
        %v510 = vrot.slane %v450, 1
        %v511 = vsel %vm481, %v508, %v510
        %v512 = vrot.slane %v451, 1
        %v513 = vrot.slane %v452, 1
        %v514 = vsel %vm481, %v512, %v513
        %v515 = vrot.slane %v453, 1
        %v516 = vsel %vm481, %v513, %v515
        %v517 = vrot.slane %v454, 1
        %v518 = vrot.slane %v455, 1
        %v519 = vsel %vm481, %v517, %v518
        %v520 = vrot.slane %v456, 1
        %v521 = vsel %vm481, %v518, %v520
        %v538 = vadd.f32 %v405, %v484
        %v539 = vadd.f32 %v406, %v486
        %v540 = vadd.f32 %v407, %v489
        %v541 = vadd.f32 %v408, %v491
        %v542 = vadd.f32 %v409, %v494
        %v543 = vadd.f32 %v410, %v496
        %v544 = vadd.f32 %v411, %v499
        %v545 = vadd.f32 %v412, %v501
        %v546 = vadd.f32 %v413, %v504
        %v547 = vadd.f32 %v414, %v506
        %v548 = vadd.f32 %v415, %v509
        %v549 = vadd.f32 %v416, %v511
        %v550 = vadd.f32 %v417, %v514
        %v551 = vadd.f32 %v418, %v516
        %v552 = vadd.f32 %v419, %v519
        %v553 = vadd.f32 %v420, %v521
        %v554 = vlaneseq
        %v555 = vshrl.u32 %v554, 7
        %v556 = vsub.s32 2, %v555
        %v557 = vrot.slane %v367, %v556
        %v558 = vmul.f32 %v369, %v557
        %v559 = vmul.f32 %v370, %v557
        %v560 = vmul.f32 %v421, %v557
        %v561 = vmul.f32 %v371, %v557
        %v562 = vmul.f32 %v372, %v557
        %v563 = vmul.f32 %v422, %v557
        %v564 = vmul.f32 %v373, %v557
        %v565 = vmul.f32 %v374, %v557
        %v566 = vmul.f32 %v423, %v557
        %v567 = vmul.f32 %v375, %v557
        %v568 = vmul.f32 %v376, %v557
        %v569 = vmul.f32 %v424, %v557
        %v570 = vmul.f32 %v377, %v557
        %v571 = vmul.f32 %v378, %v557
        %v572 = vmul.f32 %v425, %v557
        %v573 = vmul.f32 %v379, %v557
        %v574 = vmul.f32 %v380, %v557
        %v575 = vmul.f32 %v426, %v557
        %v576 = vmul.f32 %v381, %v557
        %v577 = vmul.f32 %v382, %v557
        %v578 = vmul.f32 %v427, %v557
        %v579 = vmul.f32 %v383, %v557
        %v580 = vmul.f32 %v384, %v557
        %v581 = vmul.f32 %v428, %v557
        %vm606 = vcmask 1045504
        %v607 = vrot.slane %v558, 2
        %v608 = vrot.slane %v559, 2
        %v609 = vsel %vm606, %v607, %v608
        %v610 = vrot.slane %v560, 2
        %v611 = vsel %vm606, %v608, %v610
        %v612 = vrot.slane %v561, 2
        %v613 = vrot.slane %v562, 2
        %v614 = vsel %vm606, %v612, %v613
        %v615 = vrot.slane %v563, 2
        %v616 = vsel %vm606, %v613, %v615
        %v617 = vrot.slane %v564, 2
        %v618 = vrot.slane %v565, 2
        %v619 = vsel %vm606, %v617, %v618
        %v620 = vrot.slane %v566, 2
        %v621 = vsel %vm606, %v618, %v620
        %v622 = vrot.slane %v567, 2
        %v623 = vrot.slane %v568, 2
        %v624 = vsel %vm606, %v622, %v623
        %v625 = vrot.slane %v569, 2
        %v626 = vsel %vm606, %v623, %v625
        %v627 = vrot.slane %v570, 2
        %v628 = vrot.slane %v571, 2
        %v629 = vsel %vm606, %v627, %v628
        %v630 = vrot.slane %v572, 2
        %v631 = vsel %vm606, %v628, %v630
        %v632 = vrot.slane %v573, 2
        %v633 = vrot.slane %v574, 2
        %v634 = vsel %vm606, %v632, %v633
        %v635 = vrot.slane %v575, 2
        %v636 = vsel %vm606, %v633, %v635
        %v637 = vrot.slane %v576, 2
        %v638 = vrot.slane %v577, 2
        %v639 = vsel %vm606, %v637, %v638
        %v640 = vrot.slane %v578, 2
        %v641 = vsel %vm606, %v638, %v640
        %v642 = vrot.slane %v579, 2
        %v643 = vrot.slane %v580, 2
        %v644 = vsel %vm606, %v642, %v643
        %v645 = vrot.slane %v581, 2
        %v646 = vsel %vm606, %v643, %v645
        %v663 = vadd.f32 %v538, %v609
        %v664 = vadd.f32 %v539, %v611
        %v665 = vadd.f32 %v540, %v614
        %v666 = vadd.f32 %v541, %v616
        %v667 = vadd.f32 %v542, %v619
        %v668 = vadd.f32 %v543, %v621
        %v669 = vadd.f32 %v544, %v624
        %v670 = vadd.f32 %v545, %v626
        %v671 = vadd.f32 %v546, %v629
        %v672 = vadd.f32 %v547, %v631
        %v673 = vadd.f32 %v548, %v634
        %v674 = vadd.f32 %v549, %v636
        %v675 = vadd.f32 %v550, %v639
        %v676 = vadd.f32 %v551, %v641
        %v677 = vadd.f32 %v552, %v644
        %v678 = vadd.f32 %v553, %v646
        %v679 = vunpack.c.l.bf16 %v359
        %v680 = vunpack.c.l.bf16 %v360
        %v681 = vlaneseq
        %v682 = vshrl.u32 %v681, 7
        %v683 = vsub.s32 3, %v682
        %v684 = vrot.slane %v367, %v683
        %v685 = vmul.f32 %v371, %v684
        %v686 = vmul.f32 %v372, %v684
        %v687 = vmul.f32 %v373, %v684
        %v688 = vmul.f32 %v374, %v684
        %v689 = vmul.f32 %v375, %v684
        %v690 = vmul.f32 %v376, %v684
        %v691 = vmul.f32 %v377, %v684
        %v692 = vmul.f32 %v378, %v684
        %v693 = vmul.f32 %v379, %v684
        %v694 = vmul.f32 %v380, %v684
        %v695 = vmul.f32 %v381, %v684
        %v696 = vmul.f32 %v382, %v684
        %v697 = vmul.f32 %v383, %v684
        %v698 = vmul.f32 %v384, %v684
        %v699 = vmul.f32 %v679, %v684
        %v700 = vmul.f32 %v680, %v684
        %v701 = vadd.f32 %v663, %v685
        %v702 = vadd.f32 %v664, %v686
        %v703 = vadd.f32 %v665, %v687
        %v704 = vadd.f32 %v666, %v688
        %v705 = vadd.f32 %v667, %v689
        %v706 = vadd.f32 %v668, %v690
        %v707 = vadd.f32 %v669, %v691
        %v708 = vadd.f32 %v670, %v692
        %v709 = vadd.f32 %v671, %v693
        %v710 = vadd.f32 %v672, %v694
        %v711 = vadd.f32 %v673, %v695
        %v712 = vadd.f32 %v674, %v696
        %v713 = vadd.f32 %v675, %v697
        %v714 = vadd.f32 %v676, %v698
        %v715 = vadd.f32 %v677, %v699
        %v716 = vadd.f32 %v678, %v700
        %v717 = vunpack.c.l.bf16 %v361
        %v718 = vlaneseq
        %v719 = vshrl.u32 %v718, 7
        %v720 = vsub.s32 4, %v719
        %v721 = vrot.slane %v367, %v720
        %v722 = vmul.f32 %v371, %v721
        %v723 = vmul.f32 %v372, %v721
        %v724 = vmul.f32 %v422, %v721
        %v725 = vmul.f32 %v373, %v721
        %v726 = vmul.f32 %v374, %v721
        %v727 = vmul.f32 %v423, %v721
        %v728 = vmul.f32 %v375, %v721
        %v729 = vmul.f32 %v376, %v721
        %v730 = vmul.f32 %v424, %v721
        %v731 = vmul.f32 %v377, %v721
        %v732 = vmul.f32 %v378, %v721
        %v733 = vmul.f32 %v425, %v721
        %v734 = vmul.f32 %v379, %v721
        %v735 = vmul.f32 %v380, %v721
        %v736 = vmul.f32 %v426, %v721
        %v737 = vmul.f32 %v381, %v721
        %v738 = vmul.f32 %v382, %v721
        %v739 = vmul.f32 %v427, %v721
        %v740 = vmul.f32 %v383, %v721
        %v741 = vmul.f32 %v384, %v721
        %v742 = vmul.f32 %v428, %v721
        %v743 = vmul.f32 %v679, %v721
        %v744 = vmul.f32 %v680, %v721
        %v745 = vmul.f32 %v717, %v721
        %v770 = vrot.slane %v722, 1
        %v771 = vrot.slane %v723, 1
        %v772 = vsel %vm481, %v770, %v771
        %v773 = vrot.slane %v724, 1
        %v774 = vsel %vm481, %v771, %v773
        %v775 = vrot.slane %v725, 1
        %v776 = vrot.slane %v726, 1
        %v777 = vsel %vm481, %v775, %v776
        %v778 = vrot.slane %v727, 1
        %v779 = vsel %vm481, %v776, %v778
        %v780 = vrot.slane %v728, 1
        %v781 = vrot.slane %v729, 1
        %v782 = vsel %vm481, %v780, %v781
        %v783 = vrot.slane %v730, 1
        %v784 = vsel %vm481, %v781, %v783
        %v785 = vrot.slane %v731, 1
        %v786 = vrot.slane %v732, 1
        %v787 = vsel %vm481, %v785, %v786
        %v788 = vrot.slane %v733, 1
        %v789 = vsel %vm481, %v786, %v788
        %v790 = vrot.slane %v734, 1
        %v791 = vrot.slane %v735, 1
        %v792 = vsel %vm481, %v790, %v791
        %v793 = vrot.slane %v736, 1
        %v794 = vsel %vm481, %v791, %v793
        %v795 = vrot.slane %v737, 1
        %v796 = vrot.slane %v738, 1
        %v797 = vsel %vm481, %v795, %v796
        %v798 = vrot.slane %v739, 1
        %v799 = vsel %vm481, %v796, %v798
        %v800 = vrot.slane %v740, 1
        %v801 = vrot.slane %v741, 1
        %v802 = vsel %vm481, %v800, %v801
        %v803 = vrot.slane %v742, 1
        %v804 = vsel %vm481, %v801, %v803
        %v805 = vrot.slane %v743, 1
        %v806 = vrot.slane %v744, 1
        %v807 = vsel %vm481, %v805, %v806
        %v808 = vrot.slane %v745, 1
        %v809 = vsel %vm481, %v806, %v808
        %v826 = vadd.f32 %v701, %v772
        %v827 = vadd.f32 %v702, %v774
        %v828 = vadd.f32 %v703, %v777
        %v829 = vadd.f32 %v704, %v779
        %v830 = vadd.f32 %v705, %v782
        %v831 = vadd.f32 %v706, %v784
        %v832 = vadd.f32 %v707, %v787
        %v833 = vadd.f32 %v708, %v789
        %v834 = vadd.f32 %v709, %v792
        %v835 = vadd.f32 %v710, %v794
        %v836 = vadd.f32 %v711, %v797
        %v837 = vadd.f32 %v712, %v799
        %v838 = vadd.f32 %v713, %v802
        %v839 = vadd.f32 %v714, %v804
        %v840 = vadd.f32 %v715, %v807
        %v841 = vadd.f32 %v716, %v809
        %v842 = vlaneseq
        %v843 = vshrl.u32 %v842, 7
        %v844 = vsub.s32 5, %v843
        %v845 = vrot.slane %v367, %v844
        %v846 = vmul.f32 %v371, %v845
        %v847 = vmul.f32 %v372, %v845
        %v848 = vmul.f32 %v422, %v845
        %v849 = vmul.f32 %v373, %v845
        %v850 = vmul.f32 %v374, %v845
        %v851 = vmul.f32 %v423, %v845
        %v852 = vmul.f32 %v375, %v845
        %v853 = vmul.f32 %v376, %v845
        %v854 = vmul.f32 %v424, %v845
        %v855 = vmul.f32 %v377, %v845
        %v856 = vmul.f32 %v378, %v845
        %v857 = vmul.f32 %v425, %v845
        %v858 = vmul.f32 %v379, %v845
        %v859 = vmul.f32 %v380, %v845
        %v860 = vmul.f32 %v426, %v845
        %v861 = vmul.f32 %v381, %v845
        %v862 = vmul.f32 %v382, %v845
        %v863 = vmul.f32 %v427, %v845
        %v864 = vmul.f32 %v383, %v845
        %v865 = vmul.f32 %v384, %v845
        %v866 = vmul.f32 %v428, %v845
        %v867 = vmul.f32 %v679, %v845
        %v868 = vmul.f32 %v680, %v845
        %v869 = vmul.f32 %v717, %v845
        %v894 = vrot.slane %v846, 2
        %v895 = vrot.slane %v847, 2
        %v896 = vsel %vm606, %v894, %v895
        %v897 = vrot.slane %v848, 2
        %v898 = vsel %vm606, %v895, %v897
        %v899 = vrot.slane %v849, 2
        %v900 = vrot.slane %v850, 2
        %v901 = vsel %vm606, %v899, %v900
        %v902 = vrot.slane %v851, 2
        %v903 = vsel %vm606, %v900, %v902
        %v904 = vrot.slane %v852, 2
        %v905 = vrot.slane %v853, 2
        %v906 = vsel %vm606, %v904, %v905
        %v907 = vrot.slane %v854, 2
        %v908 = vsel %vm606, %v905, %v907
        %v909 = vrot.slane %v855, 2
        %v910 = vrot.slane %v856, 2
        %v911 = vsel %vm606, %v909, %v910
        %v912 = vrot.slane %v857, 2
        %v913 = vsel %vm606, %v910, %v912
        %v914 = vrot.slane %v858, 2
        %v915 = vrot.slane %v859, 2
        %v916 = vsel %vm606, %v914, %v915
        %v917 = vrot.slane %v860, 2
        %v918 = vsel %vm606, %v915, %v917
        %v919 = vrot.slane %v861, 2
        %v920 = vrot.slane %v862, 2
        %v921 = vsel %vm606, %v919, %v920
        %v922 = vrot.slane %v863, 2
        %v923 = vsel %vm606, %v920, %v922
        %v924 = vrot.slane %v864, 2
        %v925 = vrot.slane %v865, 2
        %v926 = vsel %vm606, %v924, %v925
        %v927 = vrot.slane %v866, 2
        %v928 = vsel %vm606, %v925, %v927
        %v929 = vrot.slane %v867, 2
        %v930 = vrot.slane %v868, 2
        %v931 = vsel %vm606, %v929, %v930
        %v932 = vrot.slane %v869, 2
        %v933 = vsel %vm606, %v930, %v932
        %v950 = vadd.f32 %v826, %v896
        %v951 = vadd.f32 %v827, %v898
        %v952 = vadd.f32 %v828, %v901
        %v953 = vadd.f32 %v829, %v903
        %v954 = vadd.f32 %v830, %v906
        %v955 = vadd.f32 %v831, %v908
        %v956 = vadd.f32 %v832, %v911
        %v957 = vadd.f32 %v833, %v913
        %v958 = vadd.f32 %v834, %v916
        %v959 = vadd.f32 %v835, %v918
        %v960 = vadd.f32 %v836, %v921
        %v961 = vadd.f32 %v837, %v923
        %v962 = vadd.f32 %v838, %v926
        %v963 = vadd.f32 %v839, %v928
        %v964 = vadd.f32 %v840, %v931
        %v965 = vadd.f32 %v841, %v933
        %v966 = vunpack.c.l.bf16 %v362
        %v967 = vunpack.c.l.bf16 %v363
        %v968 = vlaneseq
        %v969 = vshrl.u32 %v968, 7
        %v970 = vsub.s32 6, %v969
        %v971 = vrot.slane %v367, %v970
        %v972 = vmul.f32 %v373, %v971
        %v973 = vmul.f32 %v374, %v971
        %v974 = vmul.f32 %v375, %v971
        %v975 = vmul.f32 %v376, %v971
        %v976 = vmul.f32 %v377, %v971
        %v977 = vmul.f32 %v378, %v971
        %v978 = vmul.f32 %v379, %v971
        %v979 = vmul.f32 %v380, %v971
        %v980 = vmul.f32 %v381, %v971
        %v981 = vmul.f32 %v382, %v971
        %v982 = vmul.f32 %v383, %v971
        %v983 = vmul.f32 %v384, %v971
        %v984 = vmul.f32 %v679, %v971
        %v985 = vmul.f32 %v680, %v971
        %v986 = vmul.f32 %v966, %v971
        %v987 = vmul.f32 %v967, %v971
        %v988 = vadd.f32 %v950, %v972
        %v989 = vadd.f32 %v951, %v973
        %v990 = vadd.f32 %v952, %v974
        %v991 = vadd.f32 %v953, %v975
        %v992 = vadd.f32 %v954, %v976
        %v993 = vadd.f32 %v955, %v977
        %v994 = vadd.f32 %v956, %v978
        %v995 = vadd.f32 %v957, %v979
        %v996 = vadd.f32 %v958, %v980
        %v997 = vadd.f32 %v959, %v981
        %v998 = vadd.f32 %v960, %v982
        %v999 = vadd.f32 %v961, %v983
        %v1000 = vadd.f32 %v962, %v984
        %v1001 = vadd.f32 %v963, %v985
        %v1002 = vadd.f32 %v964, %v986
        %v1003 = vadd.f32 %v965, %v987
        %v1004 = vunpack.c.l.bf16 %v364
        %v1005 = vlaneseq
        %v1006 = vshrl.u32 %v1005, 7
        %v1007 = vsub.s32 7, %v1006
        %v1008 = vrot.slane %v367, %v1007
        %v1009 = vmul.f32 %v373, %v1008
        %v1010 = vmul.f32 %v374, %v1008
        %v1011 = vmul.f32 %v423, %v1008
        %v1012 = vmul.f32 %v375, %v1008
        %v1013 = vmul.f32 %v376, %v1008
        %v1014 = vmul.f32 %v424, %v1008
        %v1015 = vmul.f32 %v377, %v1008
        %v1016 = vmul.f32 %v378, %v1008
        %v1017 = vmul.f32 %v425, %v1008
        %v1018 = vmul.f32 %v379, %v1008
        %v1019 = vmul.f32 %v380, %v1008
        %v1020 = vmul.f32 %v426, %v1008
        %v1021 = vmul.f32 %v381, %v1008
        %v1022 = vmul.f32 %v382, %v1008
        %v1023 = vmul.f32 %v427, %v1008
        %v1024 = vmul.f32 %v383, %v1008
        %v1025 = vmul.f32 %v384, %v1008
        %v1026 = vmul.f32 %v428, %v1008
        %v1027 = vmul.f32 %v679, %v1008
        %v1028 = vmul.f32 %v680, %v1008
        %v1029 = vmul.f32 %v717, %v1008
        %v1030 = vmul.f32 %v966, %v1008
        %v1031 = vmul.f32 %v967, %v1008
        %v1032 = vmul.f32 %v1004, %v1008
        %v1057 = vrot.slane %v1009, 1
        %v1058 = vrot.slane %v1010, 1
        %v1059 = vsel %vm481, %v1057, %v1058
        %v1060 = vrot.slane %v1011, 1
        %v1061 = vsel %vm481, %v1058, %v1060
        %v1062 = vrot.slane %v1012, 1
        %v1063 = vrot.slane %v1013, 1
        %v1064 = vsel %vm481, %v1062, %v1063
        %v1065 = vrot.slane %v1014, 1
        %v1066 = vsel %vm481, %v1063, %v1065
        %v1067 = vrot.slane %v1015, 1
        %v1068 = vrot.slane %v1016, 1
        %v1069 = vsel %vm481, %v1067, %v1068
        %v1070 = vrot.slane %v1017, 1
        %v1071 = vsel %vm481, %v1068, %v1070
        %v1072 = vrot.slane %v1018, 1
        %v1073 = vrot.slane %v1019, 1
        %v1074 = vsel %vm481, %v1072, %v1073
        %v1075 = vrot.slane %v1020, 1
        %v1076 = vsel %vm481, %v1073, %v1075
        %v1077 = vrot.slane %v1021, 1
        %v1078 = vrot.slane %v1022, 1
        %v1079 = vsel %vm481, %v1077, %v1078
        %v1080 = vrot.slane %v1023, 1
        %v1081 = vsel %vm481, %v1078, %v1080
        %v1082 = vrot.slane %v1024, 1
        %v1083 = vrot.slane %v1025, 1
        %v1084 = vsel %vm481, %v1082, %v1083
        %v1085 = vrot.slane %v1026, 1
        %v1086 = vsel %vm481, %v1083, %v1085
        %v1087 = vrot.slane %v1027, 1
        %v1088 = vrot.slane %v1028, 1
        %v1089 = vsel %vm481, %v1087, %v1088
        %v1090 = vrot.slane %v1029, 1
        %v1091 = vsel %vm481, %v1088, %v1090
        %v1092 = vrot.slane %v1030, 1
        %v1093 = vrot.slane %v1031, 1
        %v1094 = vsel %vm481, %v1092, %v1093
        %v1095 = vrot.slane %v1032, 1
        %v1096 = vsel %vm481, %v1093, %v1095
        %v1113 = vadd.f32 %v988, %v1059
        %v1114 = vadd.f32 %v989, %v1061
        %v1115 = vadd.f32 %v990, %v1064
        %v1116 = vadd.f32 %v991, %v1066
        %v1117 = vadd.f32 %v992, %v1069
        %v1118 = vadd.f32 %v993, %v1071
        %v1119 = vadd.f32 %v994, %v1074
        %v1120 = vadd.f32 %v995, %v1076
        %v1121 = vadd.f32 %v996, %v1079
        %v1122 = vadd.f32 %v997, %v1081
        %v1123 = vadd.f32 %v998, %v1084
        %v1124 = vadd.f32 %v999, %v1086
        %v1125 = vadd.f32 %v1000, %v1089
        %v1126 = vadd.f32 %v1001, %v1091
        %v1127 = vadd.f32 %v1002, %v1094
        %v1128 = vadd.f32 %v1003, %v1096
        %v1129 = vlaneseq
        %v1130 = vshrl.u32 %v1129, 7
        %v1131 = vsub.s32 0, %v1130
        %v1132 = vrot.slane %v368, %v1131
        %v1133 = vmul.f32 %v373, %v1132
        %v1134 = vmul.f32 %v374, %v1132
        %v1135 = vmul.f32 %v423, %v1132
        %v1136 = vmul.f32 %v375, %v1132
        %v1137 = vmul.f32 %v376, %v1132
        %v1138 = vmul.f32 %v424, %v1132
        %v1139 = vmul.f32 %v377, %v1132
        %v1140 = vmul.f32 %v378, %v1132
        %v1141 = vmul.f32 %v425, %v1132
        %v1142 = vmul.f32 %v379, %v1132
        %v1143 = vmul.f32 %v380, %v1132
        %v1144 = vmul.f32 %v426, %v1132
        %v1145 = vmul.f32 %v381, %v1132
        %v1146 = vmul.f32 %v382, %v1132
        %v1147 = vmul.f32 %v427, %v1132
        %v1148 = vmul.f32 %v383, %v1132
        %v1149 = vmul.f32 %v384, %v1132
        %v1150 = vmul.f32 %v428, %v1132
        %v1151 = vmul.f32 %v679, %v1132
        %v1152 = vmul.f32 %v680, %v1132
        %v1153 = vmul.f32 %v717, %v1132
        %v1154 = vmul.f32 %v966, %v1132
        %v1155 = vmul.f32 %v967, %v1132
        %v1156 = vmul.f32 %v1004, %v1132
        %v1181 = vrot.slane %v1133, 2
        %v1182 = vrot.slane %v1134, 2
        %v1183 = vsel %vm606, %v1181, %v1182
        %v1184 = vrot.slane %v1135, 2
        %v1185 = vsel %vm606, %v1182, %v1184
        %v1186 = vrot.slane %v1136, 2
        %v1187 = vrot.slane %v1137, 2
        %v1188 = vsel %vm606, %v1186, %v1187
        %v1189 = vrot.slane %v1138, 2
        %v1190 = vsel %vm606, %v1187, %v1189
        %v1191 = vrot.slane %v1139, 2
        %v1192 = vrot.slane %v1140, 2
        %v1193 = vsel %vm606, %v1191, %v1192
        %v1194 = vrot.slane %v1141, 2
        %v1195 = vsel %vm606, %v1192, %v1194
        %v1196 = vrot.slane %v1142, 2
        %v1197 = vrot.slane %v1143, 2
        %v1198 = vsel %vm606, %v1196, %v1197
        %v1199 = vrot.slane %v1144, 2
        %v1200 = vsel %vm606, %v1197, %v1199
        %v1201 = vrot.slane %v1145, 2
        %v1202 = vrot.slane %v1146, 2
        %v1203 = vsel %vm606, %v1201, %v1202
        %v1204 = vrot.slane %v1147, 2
        %v1205 = vsel %vm606, %v1202, %v1204
        %v1206 = vrot.slane %v1148, 2
        %v1207 = vrot.slane %v1149, 2
        %v1208 = vsel %vm606, %v1206, %v1207
        %v1209 = vrot.slane %v1150, 2
        %v1210 = vsel %vm606, %v1207, %v1209
        %v1211 = vrot.slane %v1151, 2
        %v1212 = vrot.slane %v1152, 2
        %v1213 = vsel %vm606, %v1211, %v1212
        %v1214 = vrot.slane %v1153, 2
        %v1215 = vsel %vm606, %v1212, %v1214
        %v1216 = vrot.slane %v1154, 2
        %v1217 = vrot.slane %v1155, 2
        %v1218 = vsel %vm606, %v1216, %v1217
        %v1219 = vrot.slane %v1156, 2
        %v1220 = vsel %vm606, %v1217, %v1219
        %v1237 = vadd.f32 %v1113, %v1183
        %v1238 = vadd.f32 %v1114, %v1185
        %v1239 = vadd.f32 %v1115, %v1188
        %v1240 = vadd.f32 %v1116, %v1190
        %v1241 = vadd.f32 %v1117, %v1193
        %v1242 = vadd.f32 %v1118, %v1195
        %v1243 = vadd.f32 %v1119, %v1198
        %v1244 = vadd.f32 %v1120, %v1200
        %v1245 = vadd.f32 %v1121, %v1203
        %v1246 = vadd.f32 %v1122, %v1205
        %v1247 = vadd.f32 %v1123, %v1208
        %v1248 = vadd.f32 %v1124, %v1210
        %v1249 = vadd.f32 %v1125, %v1213
        %v1250 = vadd.f32 %v1126, %v1215
        %v1251 = vadd.f32 %v1127, %v1218
        %v1252 = vadd.f32 %v1128, %v1220
        %v1253 = vld [vmem:[%s3] sm:$0x1]
        %v1255 = vlaneseq
        %v1256 = vshrl.u32 %v1255, 7
        %v1257 = vsub.s32 0, %v1256
        %v1258 = vrot.slane %v1253, %v1257
        %v1260 = vmul.f32 %v1237, %v1258
        %v1261 = vmul.f32 %v1238, %v1258
        %v1262 = vmul.f32 %v1239, %v1258
        %v1263 = vmul.f32 %v1240, %v1258
        %v1264 = vmul.f32 %v1241, %v1258
        %v1265 = vmul.f32 %v1242, %v1258
        %v1266 = vmul.f32 %v1243, %v1258
        %v1267 = vmul.f32 %v1244, %v1258
        %v1268 = vmul.f32 %v1245, %v1258
        %v1269 = vmul.f32 %v1246, %v1258
        %v1270 = vmul.f32 %v1247, %v1258
        %v1271 = vmul.f32 %v1248, %v1258
        %v1272 = vmul.f32 %v1249, %v1258
        %v1273 = vmul.f32 %v1250, %v1258
        %v1274 = vmul.f32 %v1251, %v1258
        %v1275 = vmul.f32 %v1252, %v1258
        %v1276 = vld [vmem:[%s4] sm:$0x1]
        %v1278 = vlaneseq
        %v1279 = vshrl.u32 %v1278, 7
        %v1280 = vsub.s32 0, %v1279
        %v1281 = vrot.slane %v1276, %v1280
        %v1283 = vadd.f32 %v1260, %v1281
        %v1284 = vadd.f32 %v1261, %v1281
        %v1285 = vadd.f32 %v1262, %v1281
        %v1286 = vadd.f32 %v1263, %v1281
        %v1287 = vadd.f32 %v1264, %v1281
        %v1288 = vadd.f32 %v1265, %v1281
        %v1289 = vadd.f32 %v1266, %v1281
        %v1290 = vadd.f32 %v1267, %v1281
        %v1291 = vadd.f32 %v1268, %v1281
        %v1292 = vadd.f32 %v1269, %v1281
        %v1293 = vadd.f32 %v1270, %v1281
        %v1294 = vadd.f32 %v1271, %v1281
        %v1295 = vadd.f32 %v1272, %v1281
        %v1296 = vadd.f32 %v1273, %v1281
        %v1297 = vadd.f32 %v1274, %v1281
        %v1298 = vadd.f32 %v1275, %v1281
        %v1299 = vmax.f32 %v1283, 0.0
        %v1300 = vmax.f32 %v1284, 0.0
        %v1301 = vmax.f32 %v1285, 0.0
        %v1302 = vmax.f32 %v1286, 0.0
        %v1303 = vmax.f32 %v1287, 0.0
        %v1304 = vmax.f32 %v1288, 0.0
        %v1305 = vmax.f32 %v1289, 0.0
        %v1306 = vmax.f32 %v1290, 0.0
        %v1307 = vmax.f32 %v1291, 0.0
        %v1308 = vmax.f32 %v1292, 0.0
        %v1309 = vmax.f32 %v1293, 0.0
        %v1310 = vmax.f32 %v1294, 0.0
        %v1311 = vmax.f32 %v1295, 0.0
        %v1312 = vmax.f32 %v1296, 0.0
        %v1313 = vmax.f32 %v1297, 0.0
        %v1314 = vmax.f32 %v1298, 0.0
        %v1315 = vpack.c.bf16 %v1300, %v1299
        %v1316 = vpack.c.bf16 %v1302, %v1301
        %v1317 = vpack.c.bf16 %v1304, %v1303
        %v1318 = vpack.c.bf16 %v1306, %v1305
        %v1319 = vpack.c.bf16 %v1308, %v1307
        %v1320 = vpack.c.bf16 %v1310, %v1309
        %v1321 = vpack.c.bf16 %v1312, %v1311
        %v1322 = vpack.c.bf16 %v1314, %v1313
        %v1331 = vunpack.c.l.b16 %v1315
        %v1332 = vunpack.c.h.b16 %v1315
        %v1333 = vunpack.c.l.b16 %v1316
        %v1334 = vunpack.c.h.b16 %v1316
        %v1335 = vunpack.c.l.b16 %v1317
        %v1336 = vunpack.c.h.b16 %v1317
        %v1337 = vunpack.c.l.b16 %v1318
        %v1338 = vunpack.c.h.b16 %v1318
        %v1339 = vunpack.c.l.b16 %v1319
        %v1340 = vunpack.c.h.b16 %v1319
        %v1341 = vunpack.c.l.b16 %v1320
        %v1342 = vunpack.c.h.b16 %v1320
        %v1343 = vunpack.c.l.b16 %v1321
        %v1344 = vunpack.c.h.b16 %v1321
        %v1345 = vunpack.c.l.b16 %v1322
        %v1346 = vunpack.c.h.b16 %v1322
        %v1347 = vpack.c.b16 %v1331, %v1331
        %v1348 = vpack.c.b16 %v1332, %v1332
        %v1349 = vpack.c.b16 %v1333, %v1333
        %v1350 = vpack.c.b16 %v1334, %v1334
        %v1351 = vpack.c.b16 %v1335, %v1335
        %v1352 = vpack.c.b16 %v1336, %v1336
        %v1353 = vpack.c.b16 %v1337, %v1337
        %v1354 = vpack.c.b16 %v1338, %v1338
        %v1355 = vpack.c.b16 %v1339, %v1339
        %v1356 = vpack.c.b16 %v1340, %v1340
        %v1357 = vpack.c.b16 %v1341, %v1341
        %v1358 = vpack.c.b16 %v1342, %v1342
        %v1359 = vpack.c.b16 %v1343, %v1343
        %v1360 = vpack.c.b16 %v1344, %v1344
        %v1361 = vpack.c.b16 %v1345, %v1345
        %v1362 = vpack.c.b16 %v1346, %v1346
        %1379 = vst [vmem:[%s297] sm:$0xf] %v1347
        %1380 = vst [vmem:[%s297 + $0x4] sm:$0xf] %v1348
        %1381 = vst [vmem:[%s297 + $0x8] sm:$0xf] %v1349
        %1382 = vst [vmem:[%s297 + $0xc] sm:$0xf] %v1350
        %1383 = vst [vmem:[%s297 + $0x10] sm:$0xf] %v1351
        %1384 = vst [vmem:[%s297 + $0x14] sm:$0xf] %v1352
        %1385 = vst [vmem:[%s297 + $0x18] sm:$0xf] %v1353
        %1386 = vst [vmem:[%s297 + $0x1c] sm:$0xf] %v1354
        %1387 = vst [vmem:[%s297 + $0x20] sm:$0xf] %v1355
        %1388 = vst [vmem:[%s297 + $0x24] sm:$0xf] %v1356
        %1389 = vst [vmem:[%s297 + $0x28] sm:$0xf] %v1357
        %1390 = vst [vmem:[%s297 + $0x2c] sm:$0xf] %v1358
        %1391 = vst [vmem:[%s297 + $0x30] sm:$0xf] %v1359
        %1392 = vst [vmem:[%s297 + $0x34] sm:$0xf] %v1360
        %1393 = vst [vmem:[%s297 + $0x38] sm:$0xf] %v1361
        %1394 = vst [vmem:[%s297 + $0x3c] sm:$0xf] %v1362
        %s1395 = sand.u32 %s164, 1
        %s1396 = scalar_lea.sflag [#allocation3], %s1395
        %s1397 = sand.u32 %s164, 1
        %s1398 = smul.addr %s1397, 64
        %s1399 = scalar_lea.vmem [#allocation2], %s1398
        // Predicated region
        $region41: #{tpu_custom_call.1} parent=39 // pred_check
          %p1400 = pneg %p174
        $region42: #{tpu_custom_call.1} parent=39 // pred_check_branch
          %1402 = sbr.rel (%p1400) target = $region44
        $region43: #{tpu_custom_call.1} parent=39 // pred_region
          %s1403 = smul.u32 8, %s24
          %s1405 = ssub.s32 1024, 1024
          %1406 = vsyncadd %s1396, %s1405
          %s1407 = smul.addr %s1403, 2
          %s1408 = smul.addr %s23, 32
          %s1409 = sadd.s32 %s1407, %s1408
          %s1410 = smul.addr %s1409, 64
          %s1411 = scalar_lea.hbm %s5, %s1410
          %s1412 = sshll.u32 %s1399, 4
          %s1413 = int_to_ptr.vmem [resolvable:$true] %s1412
          %1418 = dma.vmem_to_hbm [thread:$0]  %s1413, 1024, %s1411, %s1396, 64, 64, 4
        $region44: #{tpu_custom_call.1} parent=39 // pred_fallthru
          _
      $region40: #{tpu_custom_call.1} parent=5 // pred_fallthru
        _
      %p1419 = scmp.le.s32.totalorder 2, %s14
      // Predicated region
      $region45: #{tpu_custom_call.1} parent=5 // pred_check
        %p1420 = pneg %p1419
      $region46: #{tpu_custom_call.1} parent=5 // pred_check_branch
        %1422 = sbr.rel (%p1420) target = $region48
      $region47: #{tpu_custom_call.1} parent=5 // pred_region
        %s1423 = ssub.s32 %s14, 2
        // Predicated region
        $region49: #{tpu_custom_call.1} parent=47 // pred_check
          %p1424 = pneg %p180
        $region50: #{tpu_custom_call.1} parent=47 // pred_check_branch
          %1426 = sbr.rel (%p1424) target = $region52
        $region51: #{tpu_custom_call.1} parent=47 // pred_region
          %s1427 = sand.u32 %s165, 1
          %s1428 = scalar_lea.sflag [#allocation3], %s1427
          %s1429 = sand.u32 %s165, 1
          %s1430 = smul.addr %s1429, 64
          %s1431 = scalar_lea.vmem [#allocation2], %s1430
          %1432 = dma.done %s1428, 1024
        $region52: #{tpu_custom_call.1} parent=47 // pred_fallthru
          _
      $region48: #{tpu_custom_call.1} parent=5 // pred_fallthru
        _
    $region6: #{tpu_custom_call.1} parent=1 // loop_footer
      %s18 = sadd.s32 1, %s14
    $region7: #{tpu_custom_call.1} parent=1 // loop_footer_branch
      %13 = sbr.rel target = $region3
    $region8: #{tpu_custom_call.1} parent=1 // loop_exit
      _
    %1433 = vsyncpa [#allocation3], 1
    %s1434 = scalar_lea.sflag [#allocation3], 1
    %1435 = vsyncpa %s1434, 1

</llo_original>
